<compile_context>
chip_gen: v7x
topology: tpu7x:2x2x1
jax: 0.10.0
libtpu: 0.0.40
codegen_flags: <defaults>
</compile_context>

<pallas_src>
import functools

import jax
import jax.numpy as jnp
from jax.experimental import pallas as pl
from jax.experimental.pallas import tpu as pltpu

_LANE = 128
_SUBLANE = 8


def _round_up(x, m):
    return -(-x // m) * m


def _largest_divisor_leq(n, cap):
    for d in range(min(n, cap), 0, -1):
        if n % d == 0:
            return d
    return 1


def _gru_kernel(x_ref, h0_ref, wx_ref, bx_ref, whzr_ref, whh_ref,
                whq_ref, bq_ref,
                y_ref, hout_ref,
                hcarry, xw_scr, hall_scr,
                *, tchunk, block_b, hidden_p, vocab_p, unroll, use_bf16):
    kt = pl.program_id(1)
    mdt = jnp.bfloat16 if use_bf16 else jnp.float32   # MXU operand dtype

    # Initialize the hidden-state carry at the first time chunk of each
    # batch block (time is the inner, "arbitrary" grid axis).
    @pl.when(kt == 0)
    def _():
        hcarry[...] = h0_ref[...]

    # ---- Hoisted input projection: one wide matmul for this time chunk. ---
    # x block is (tchunk, block_b, Vp) -> (tchunk*block_b, Vp); the reshape
    # only merges leading dims (lane dim untouched), so it is layout-free.
    x2d = x_ref[...].reshape(tchunk * block_b, vocab_p)
    xw_scr[...] = (
        jnp.dot(x2d.astype(mdt), wx_ref[...].astype(mdt),
                preferred_element_type=jnp.float32)
        + bx_ref[...])

    whzr = whzr_ref[...].astype(mdt)     # (Hp, 2*Hp) = [Whz | Whr], lane-aligned
    whh = whh_ref[...].astype(mdt)       # (Hp, Hp)

    def step(t, H):
        row = pl.multiple_of(t * block_b, block_b)
        xw = xw_scr[pl.ds(row, block_b), :]                         # (Bb, 3Hp)
        hzr = jnp.dot(H.astype(mdt), whzr,
                      preferred_element_type=jnp.float32)           # (Bb, 2Hp)
        # Gate slices are at 128-lane boundaries -> plain vreg views.
        Z = jax.nn.sigmoid(xw[:, 0:hidden_p] + hzr[:, 0:hidden_p])
        R = jax.nn.sigmoid(xw[:, hidden_p:2 * hidden_p]
                           + hzr[:, hidden_p:2 * hidden_p])
        H_tilda = jnp.tanh(
            xw[:, 2 * hidden_p:3 * hidden_p]
            + jnp.dot((R * H).astype(mdt), whh,
                      preferred_element_type=jnp.float32))
        H_new = Z * H + (1.0 - Z) * H_tilda          # elementwise stays f32
        hall_scr[pl.ds(row, block_b), :] = H_new
        return H_new

    H_final = jax.lax.fori_loop(0, tchunk, step, hcarry[...], unroll=unroll)
    hcarry[...] = H_final
    hout_ref[...] = H_final.astype(hout_ref.dtype)

    # ---- Hoisted output projection: one wide matmul for this chunk. -------
    y2d = (jnp.dot(hall_scr[...].astype(mdt), whq_ref[...].astype(mdt),
                   preferred_element_type=jnp.float32)
           + bq_ref[...])
    y_ref[...] = y2d.reshape(tchunk, block_b, vocab_p).astype(y_ref.dtype)


def pack_params(params, vocab, hidden):
    """Fuse + lane-pad the weights once (hoisted out of the forward call).

    Each gate occupies its own 128-lane-aligned column block so in-kernel
    gate extraction is a plain vreg view; padded rows/cols are zero so the
    padded hidden/vocab lanes stay exactly zero through the recurrence.
    """
    (wxz, whz, bz, wxr, whr, br, wxh, whh, bh, whq, bq) = params
    hidden_p = _round_up(hidden, _LANE)
    vocab_p = _round_up(vocab, _LANE)
    f32 = jnp.float32

    wx_p = jnp.zeros((vocab_p, 3 * hidden_p), f32)
    wx_p = wx_p.at[:vocab, 0:hidden].set(wxz)
    wx_p = wx_p.at[:vocab, hidden_p:hidden_p + hidden].set(wxr)
    wx_p = wx_p.at[:vocab, 2 * hidden_p:2 * hidden_p + hidden].set(wxh)

    bx_p = jnp.zeros((1, 3 * hidden_p), f32)
    bx_p = bx_p.at[0, 0:hidden].set(bz)
    bx_p = bx_p.at[0, hidden_p:hidden_p + hidden].set(br)
    bx_p = bx_p.at[0, 2 * hidden_p:2 * hidden_p + hidden].set(bh)

    whzr_p = jnp.zeros((hidden_p, 2 * hidden_p), f32)
    whzr_p = whzr_p.at[:hidden, 0:hidden].set(whz)
    whzr_p = whzr_p.at[:hidden, hidden_p:hidden_p + hidden].set(whr)

    whh_p = jnp.zeros((hidden_p, hidden_p), f32).at[:hidden, :hidden].set(whh)
    whq_p = jnp.zeros((hidden_p, vocab_p), f32).at[:hidden, :vocab].set(whq)
    bq_p = jnp.zeros((1, vocab_p), f32).at[0, :vocab].set(bq)

    return (wx_p, bx_p, whzr_p, whh_p, whq_p, bq_p)


def gru_forward(inputs, h0, packed, *, max_time_chunk=16,
                use_bf16_matmul=False):
    """inputs: (seq, batch, vocab) f32; h0: (batch, hidden) f32."""
    seq, batch, vocab = inputs.shape
    hidden = h0.shape[1]
    wx_p, bx_p, whzr_p, whh_p, whq_p, bq_p = packed
    hidden_p = whh_p.shape[0]
    vocab_p = bq_p.shape[1]

    # --- batch padding / blocking (leading "parallel" axis for v7x TCs) ----
    num_batch_blocks = 2 if batch >= 16 else 1
    batch_p = _round_up(batch, _SUBLANE * num_batch_blocks)
    block_b = batch_p // num_batch_blocks

    # --- time chunking (inner "arbitrary" axis, H carried across chunks) ---
    tchunk = _largest_divisor_leq(seq, max_time_chunk)
    num_time_chunks = seq // tchunk
    unroll = min(tchunk, 8)

    inputs_p = jnp.pad(
        inputs, ((0, 0), (0, batch_p - batch), (0, vocab_p - vocab)))
    h0_p = jnp.pad(h0, ((0, batch_p - batch), (0, hidden_p - hidden)))

    weight_spec = lambda shape: pl.BlockSpec(shape, lambda b, kt: (0,) * len(shape))

    grid_spec = pltpu.PrefetchScalarGridSpec(
        num_scalar_prefetch=0,
        grid=(num_batch_blocks, num_time_chunks),
        in_specs=[
            pl.BlockSpec((tchunk, block_b, vocab_p), lambda b, kt: (kt, b, 0)),
            pl.BlockSpec((block_b, hidden_p), lambda b, kt: (b, 0)),
            weight_spec((vocab_p, 3 * hidden_p)),
            weight_spec((1, 3 * hidden_p)),
            weight_spec((hidden_p, 2 * hidden_p)),
            weight_spec((hidden_p, hidden_p)),
            weight_spec((hidden_p, vocab_p)),
            weight_spec((1, vocab_p)),
        ],
        out_specs=[
            pl.BlockSpec((tchunk, block_b, vocab_p), lambda b, kt: (kt, b, 0)),
            pl.BlockSpec((block_b, hidden_p), lambda b, kt: (b, 0)),
        ],
        scratch_shapes=[
            pltpu.VMEM((block_b, hidden_p), jnp.float32),              # H carry
            pltpu.VMEM((tchunk * block_b, 3 * hidden_p), jnp.float32),  # XW slab
            pltpu.VMEM((tchunk * block_b, hidden_p), jnp.float32),      # H_t slab
        ],
    )

    # Explicit VMEM budget (scoped defaults: 16 MiB v5e / 32 MiB v6e,v7x).
    vmem_bytes = 4 * (
        2 * 2 * tchunk * block_b * vocab_p                 # x + y, double-buffered
        + 2 * 2 * block_b * hidden_p                       # h0 + hout
        + 2 * (vocab_p * 3 * hidden_p + 3 * hidden_p
               + hidden_p * 2 * hidden_p + hidden_p * hidden_p
               + hidden_p * vocab_p + vocab_p)             # weights
        + block_b * hidden_p                               # hcarry scratch
        + tchunk * block_b * 3 * hidden_p                  # xw scratch
        + tchunk * block_b * hidden_p)                     # hall scratch
    vmem_limit = min(max(int(vmem_bytes * 1.5) + (1 << 20), 16 << 20), 64 << 20)

    kernel = functools.partial(
        _gru_kernel, tchunk=tchunk, block_b=block_b, hidden_p=hidden_p,
        vocab_p=vocab_p, unroll=unroll, use_bf16=use_bf16_matmul)

    y_p, h_final_p = pl.pallas_call(
        kernel,
        out_shape=(
            jax.ShapeDtypeStruct((seq, batch_p, vocab_p), jnp.float32),
            jax.ShapeDtypeStruct((batch_p, hidden_p), jnp.float32),
        ),
        grid_spec=grid_spec,
        compiler_params=pltpu.CompilerParams(
            dimension_semantics=("parallel", "arbitrary"),
            vmem_limit_bytes=vmem_limit),
    )(inputs_p, h0_p, wx_p, bx_p, whzr_p, whh_p, whq_p, bq_p)

    y = y_p[:, :batch, :vocab]
    h_final = h_final_p[:batch, :hidden]
    return y, (h_final,)


def init_params(key, vocab_size, hidden_size):
    ks = jax.random.split(key, 7)
    scale = 0.01
    wxz = jax.random.normal(ks[0], (vocab_size, hidden_size), jnp.float32) * scale
    whz = jax.random.normal(ks[1], (hidden_size, hidden_size), jnp.float32) * scale
    bz = jnp.zeros((hidden_size,), jnp.float32)
    wxr = jax.random.normal(ks[2], (vocab_size, hidden_size), jnp.float32) * scale
    whr = jax.random.normal(ks[3], (hidden_size, hidden_size), jnp.float32) * scale
    br = jnp.zeros((hidden_size,), jnp.float32)
    wxh = jax.random.normal(ks[4], (vocab_size, hidden_size), jnp.float32) * scale
    whh = jax.random.normal(ks[5], (hidden_size, hidden_size), jnp.float32) * scale
    bh = jnp.zeros((hidden_size,), jnp.float32)
    whq = jax.random.normal(ks[6], (hidden_size, vocab_size), jnp.float32) * scale
    bq = jnp.zeros((vocab_size,), jnp.float32)
    return (wxz, whz, bz, wxr, whr, br, wxh, whh, bh, whq, bq)


def gru_reference(inputs, h0, params):
    """Pure-JAX reference mirroring the PyTorch forward exactly."""
    (wxz, whz, bz, wxr, whr, br, wxh, whh, bh, whq, bq) = params
    H = h0
    outs = []
    for t in range(inputs.shape[0]):
        X = inputs[t]
        Z = jax.nn.sigmoid(X @ wxz + H @ whz + bz)
        R = jax.nn.sigmoid(X @ wxr + H @ whr + br)
        H_tilda = jnp.tanh(X @ wxh + (R * H) @ whh + bh)
        H = Z * H + (1.0 - Z) * H_tilda
        outs.append(H @ whq + bq)
    return jnp.stack(outs), (H,)


if __name__ == "__main__":
    seq, batch, vocab, hidden = 8, 4, 16, 32

    key = jax.random.PRNGKey(0)
    k_in, k_param = jax.random.split(key)

    params = init_params(k_param, vocab, hidden)
    packed = pack_params(params, vocab, hidden)     # hoisted weight fusion
    inputs = jax.random.normal(k_in, (seq, batch, vocab), jnp.float32)
    h0 = jnp.zeros((batch, hidden), jnp.float32)    # begin_state

    # f32 matmul operands by default to match the PyTorch module's numerics;
    # set use_bf16_matmul=True on v6e/v7x for ~2x MXU throughput.
    y, (h_final,) = gru_forward(inputs, h0, packed, use_bf16_matmul=False)
    jax.block_until_ready(y)
    jax.block_until_ready(h_final)

    y_ref, (h_ref,) = gru_reference(inputs, h0, params)
    assert jnp.allclose(y, y_ref, atol=1e-5, rtol=1e-5)
    assert jnp.allclose(h_final, h_ref, atol=1e-5, rtol=1e-5)

    print("KERNEL_OK")
</pallas_src>

<mosaic_0001>
module attributes {stable_mosaic.version = 11 : i64} {
  func.func @_gru_kernel(%arg0: i32, %arg1: i32, %arg2: memref<8x8x128xf32, #tpu.memory_space<vmem>>, %arg3: memref<8x128xf32, #tpu.memory_space<vmem>>, %arg4: memref<128x384xf32, #tpu.memory_space<vmem>>, %arg5: memref<1x384xf32, #tpu.memory_space<vmem>>, %arg6: memref<128x256xf32, #tpu.memory_space<vmem>>, %arg7: memref<128x128xf32, #tpu.memory_space<vmem>>, %arg8: memref<128x128xf32, #tpu.memory_space<vmem>>, %arg9: memref<1x128xf32, #tpu.memory_space<vmem>>, %arg10: memref<8x8x128xf32, #tpu.memory_space<vmem>>, %arg11: memref<8x128xf32, #tpu.memory_space<vmem>>, %arg12: memref<8x128xf32, #tpu.memory_space<vmem>>, %arg13: memref<64x384xf32, #tpu.memory_space<vmem>>, %arg14: memref<64x128xf32, #tpu.memory_space<vmem>>) attributes {dimension_semantics = [#tpu.dimension_semantics<parallel>, #tpu.dimension_semantics<arbitrary>], iteration_bounds = array<i64: 1, 1>, scalar_prefetch = 0 : i64, scratch_operands = 3 : i64, tpu.core_type = #tpu.core_type<tc>, window_params = [{transform_indices = @transform_0, window_bounds = array<i64: 8, 8, 128>}, {transform_indices = @transform_1, window_bounds = array<i64: 8, 128>}, {pipeline_mode = #tpu.pipeline_mode<synchronous>, transform_indices = @transform_2, window_bounds = array<i64: 128, 384>}, {pipeline_mode = #tpu.pipeline_mode<synchronous>, transform_indices = @transform_3, window_bounds = array<i64: 1, 384>}, {pipeline_mode = #tpu.pipeline_mode<synchronous>, transform_indices = @transform_4, window_bounds = array<i64: 128, 256>}, {pipeline_mode = #tpu.pipeline_mode<synchronous>, transform_indices = @transform_5, window_bounds = array<i64: 128, 128>}, {pipeline_mode = #tpu.pipeline_mode<synchronous>, transform_indices = @transform_6, window_bounds = array<i64: 128, 128>}, {pipeline_mode = #tpu.pipeline_mode<synchronous>, transform_indices = @transform_7, window_bounds = array<i64: 1, 128>}, {transform_indices = @transform_8, window_bounds = array<i64: 8, 8, 128>}, {transform_indices = @transform_9, window_bounds = array<i64: 8, 128>}]} {
    %c0_i32 = arith.constant 0 : i32
    %0 = arith.cmpi eq, %arg1, %c0_i32 : i32
    %1 = arith.extui %0 : i1 to i32
    %c0_i32_0 = arith.constant 0 : i32
    %2 = arith.cmpi ne, %1, %c0_i32_0 : i32
    scf.if %2 {
      %c0_94 = arith.constant 0 : index
      %c0_95 = arith.constant 0 : index
      %288 = vector.load %arg3[%c0_94, %c0_95] : memref<8x128xf32, #tpu.memory_space<vmem>>, vector<8x128xf32>
      %c0_96 = arith.constant 0 : index
      %c0_97 = arith.constant 0 : index
      %289 = vector.load %arg12[%c0_96, %c0_97] : memref<8x128xf32, #tpu.memory_space<vmem>>, vector<8x128xf32>
      tpu.vector_store %arg12[%c0_96, %c0_97], %288 {strides = array<i32>} : memref<8x128xf32, #tpu.memory_space<vmem>>, vector<8x128xf32>,
    } else {
    }
    %c0 = arith.constant 0 : index
    %c0_1 = arith.constant 0 : index
    %c0_2 = arith.constant 0 : index
    %3 = vector.load %arg2[%c0, %c0_1, %c0_2] : memref<8x8x128xf32, #tpu.memory_space<vmem>>, vector<8x8x128xf32>
    %4 = vector.shape_cast %3 : vector<8x8x128xf32> to vector<64x128xf32>
    %c0_3 = arith.constant 0 : index
    %c0_4 = arith.constant 0 : index
    %5 = vector.load %arg4[%c0_3, %c0_4] : memref<128x384xf32, #tpu.memory_space<vmem>>, vector<128x384xf32>
    %cst = arith.constant dense<0.000000e+00> : vector<64x384xf32>
    %6 = tpu.matmul %4, %5, %cst {dimension_numbers = #tpu.dot_dimension_numbers<[1], [0], [0], [1], [0, 0, 1, 1], [], []>} : vector<64x128xf32>, vector<128x384xf32>, vector<64x384xf32> -> vector<64x384xf32>
    %c0_5 = arith.constant 0 : index
    %c0_6 = arith.constant 0 : index
    %7 = vector.load %arg5[%c0_5, %c0_6] : memref<1x384xf32, #tpu.memory_space<vmem>>, vector<1x384xf32>
    %8 = vector.broadcast %7 : vector<1x384xf32> to vector<64x384xf32>
    %9 = arith.addf %6, %8 : vector<64x384xf32>
    %c0_7 = arith.constant 0 : index
    %c0_8 = arith.constant 0 : index
    %10 = vector.load %arg13[%c0_7, %c0_8] : memref<64x384xf32, #tpu.memory_space<vmem>>, vector<64x384xf32>
    tpu.vector_store %arg13[%c0_7, %c0_8], %9 {strides = array<i32>} : memref<64x384xf32, #tpu.memory_space<vmem>>, vector<64x384xf32>,
    %c0_9 = arith.constant 0 : index
    %c0_10 = arith.constant 0 : index
    %11 = vector.load %arg6[%c0_9, %c0_10] : memref<128x256xf32, #tpu.memory_space<vmem>>, vector<128x256xf32>
    %c0_11 = arith.constant 0 : index
    %c0_12 = arith.constant 0 : index
    %12 = vector.load %arg7[%c0_11, %c0_12] : memref<128x128xf32, #tpu.memory_space<vmem>>, vector<128x128xf32>
    %c0_13 = arith.constant 0 : index
    %c0_14 = arith.constant 0 : index
    %13 = vector.load %arg12[%c0_13, %c0_14] : memref<8x128xf32, #tpu.memory_space<vmem>>, vector<8x128xf32>
    %c0_i32_15 = arith.constant 0 : i32
    %c8_i32 = arith.constant 8 : i32
    %14 = arith.muli %c0_i32_15, %c8_i32 : i32
    %15 = tpu.assume_multiple %14, 8 : i32
    %16 = arith.index_cast %15 : i32 to index
    %c0_16 = arith.constant 0 : index
    %17 = vector.load %arg13[%16, %c0_16] : memref<64x384xf32, #tpu.memory_space<vmem>>, vector<8x384xf32>
    %cst_17 = arith.constant dense<0.000000e+00> : vector<8x256xf32>
    %18 = tpu.matmul %13, %11, %cst_17 {dimension_numbers = #tpu.dot_dimension_numbers<[1], [0], [0], [1], [0, 0, 1, 1], [], []>} : vector<8x128xf32>, vector<128x256xf32>, vector<8x256xf32> -> vector<8x256xf32>
    %19 = vector.extract_strided_slice %17 {offsets = [0, 0], sizes = [8, 128], strides = [1, 1]} : vector<8x384xf32> to vector<8x128xf32>
    %20 = vector.extract_strided_slice %18 {offsets = [0, 0], sizes = [8, 128], strides = [1, 1]} : vector<8x256xf32> to vector<8x128xf32>
    %21 = arith.addf %19, %20 : vector<8x128xf32>
    %22 = arith.negf %21 : vector<8x128xf32>
    %23 = math.exp %22 : vector<8x128xf32>
    %cst_18 = arith.constant 1.000000e+00 : f32
    %24 = vector.broadcast %cst_18 : f32 to vector<8x128xf32>
    %25 = arith.addf %24, %23 : vector<8x128xf32>
    %26 = arith.divf %24, %25 : vector<8x128xf32>
    %27 = vector.extract_strided_slice %17 {offsets = [0, 128], sizes = [8, 128], strides = [1, 1]} : vector<8x384xf32> to vector<8x128xf32>
    %28 = vector.extract_strided_slice %18 {offsets = [0, 128], sizes = [8, 128], strides = [1, 1]} : vector<8x256xf32> to vector<8x128xf32>
    %29 = arith.addf %27, %28 : vector<8x128xf32>
    %30 = arith.negf %29 : vector<8x128xf32>
    %31 = math.exp %30 : vector<8x128xf32>
    %cst_19 = arith.constant 1.000000e+00 : f32
    %32 = vector.broadcast %cst_19 : f32 to vector<8x128xf32>
    %33 = arith.addf %32, %31 : vector<8x128xf32>
    %34 = arith.divf %32, %33 : vector<8x128xf32>
    %35 = vector.extract_strided_slice %17 {offsets = [0, 256], sizes = [8, 128], strides = [1, 1]} : vector<8x384xf32> to vector<8x128xf32>
    %36 = arith.mulf %34, %13 : vector<8x128xf32>
    %cst_20 = arith.constant dense<0.000000e+00> : vector<8x128xf32>
    %37 = tpu.matmul %36, %12, %cst_20 {dimension_numbers = #tpu.dot_dimension_numbers<[1], [0], [0], [1], [0, 0, 1, 1], [], []>} : vector<8x128xf32>, vector<128x128xf32>, vector<8x128xf32> -> vector<8x128xf32>
    %38 = arith.addf %35, %37 : vector<8x128xf32>
    %39 = math.tanh %38 : vector<8x128xf32>
    %40 = arith.mulf %26, %13 : vector<8x128xf32>
    %cst_21 = arith.constant 1.000000e+00 : f32
    %41 = vector.broadcast %cst_21 : f32 to vector<8x128xf32>
    %42 = arith.subf %41, %26 : vector<8x128xf32>
    %43 = arith.mulf %42, %39 : vector<8x128xf32>
    %44 = arith.addf %40, %43 : vector<8x128xf32>
    %45 = arith.index_cast %15 : i32 to index
    %c0_22 = arith.constant 0 : index
    %46 = vector.load %arg14[%45, %c0_22] : memref<64x128xf32, #tpu.memory_space<vmem>>, vector<8x128xf32>
    tpu.vector_store %arg14[%45, %c0_22], %44 {strides = array<i32>} : memref<64x128xf32, #tpu.memory_space<vmem>>, vector<8x128xf32>,
    %c1_i32 = arith.constant 1 : i32
    %c8_i32_23 = arith.constant 8 : i32
    %47 = arith.muli %c1_i32, %c8_i32_23 : i32
    %48 = tpu.assume_multiple %47, 8 : i32
    %49 = arith.index_cast %48 : i32 to index
    %c0_24 = arith.constant 0 : index
    %50 = vector.load %arg13[%49, %c0_24] : memref<64x384xf32, #tpu.memory_space<vmem>>, vector<8x384xf32>
    %cst_25 = arith.constant dense<0.000000e+00> : vector<8x256xf32>
    %51 = tpu.matmul %44, %11, %cst_25 {dimension_numbers = #tpu.dot_dimension_numbers<[1], [0], [0], [1], [0, 0, 1, 1], [], []>} : vector<8x128xf32>, vector<128x256xf32>, vector<8x256xf32> -> vector<8x256xf32>
    %52 = vector.extract_strided_slice %50 {offsets = [0, 0], sizes = [8, 128], strides = [1, 1]} : vector<8x384xf32> to vector<8x128xf32>
    %53 = vector.extract_strided_slice %51 {offsets = [0, 0], sizes = [8, 128], strides = [1, 1]} : vector<8x256xf32> to vector<8x128xf32>
    %54 = arith.addf %52, %53 : vector<8x128xf32>
    %55 = arith.negf %54 : vector<8x128xf32>
    %56 = math.exp %55 : vector<8x128xf32>
    %cst_26 = arith.constant 1.000000e+00 : f32
    %57 = vector.broadcast %cst_26 : f32 to vector<8x128xf32>
    %58 = arith.addf %57, %56 : vector<8x128xf32>
    %59 = arith.divf %57, %58 : vector<8x128xf32>
    %60 = vector.extract_strided_slice %50 {offsets = [0, 128], sizes = [8, 128], strides = [1, 1]} : vector<8x384xf32> to vector<8x128xf32>
    %61 = vector.extract_strided_slice %51 {offsets = [0, 128], sizes = [8, 128], strides = [1, 1]} : vector<8x256xf32> to vector<8x128xf32>
    %62 = arith.addf %60, %61 : vector<8x128xf32>
    %63 = arith.negf %62 : vector<8x128xf32>
    %64 = math.exp %63 : vector<8x128xf32>
    %cst_27 = arith.constant 1.000000e+00 : f32
    %65 = vector.broadcast %cst_27 : f32 to vector<8x128xf32>
    %66 = arith.addf %65, %64 : vector<8x128xf32>
    %67 = arith.divf %65, %66 : vector<8x128xf32>
    %68 = vector.extract_strided_slice %50 {offsets = [0, 256], sizes = [8, 128], strides = [1, 1]} : vector<8x384xf32> to vector<8x128xf32>
    %69 = arith.mulf %67, %44 : vector<8x128xf32>
    %cst_28 = arith.constant dense<0.000000e+00> : vector<8x128xf32>
    %70 = tpu.matmul %69, %12, %cst_28 {dimension_numbers = #tpu.dot_dimension_numbers<[1], [0], [0], [1], [0, 0, 1, 1], [], []>} : vector<8x128xf32>, vector<128x128xf32>, vector<8x128xf32> -> vector<8x128xf32>
    %71 = arith.addf %68, %70 : vector<8x128xf32>
    %72 = math.tanh %71 : vector<8x128xf32>
    %73 = arith.mulf %59, %44 : vector<8x128xf32>
    %cst_29 = arith.constant 1.000000e+00 : f32
    %74 = vector.broadcast %cst_29 : f32 to vector<8x128xf32>
    %75 = arith.subf %74, %59 : vector<8x128xf32>
    %76 = arith.mulf %75, %72 : vector<8x128xf32>
    %77 = arith.addf %73, %76 : vector<8x128xf32>
    %78 = arith.index_cast %48 : i32 to index
    %c0_30 = arith.constant 0 : index
    %79 = vector.load %arg14[%78, %c0_30] : memref<64x128xf32, #tpu.memory_space<vmem>>, vector<8x128xf32>
    tpu.vector_store %arg14[%78, %c0_30], %77 {strides = array<i32>} : memref<64x128xf32, #tpu.memory_space<vmem>>, vector<8x128xf32>,
    %c2_i32 = arith.constant 2 : i32
    %c8_i32_31 = arith.constant 8 : i32
    %80 = arith.muli %c2_i32, %c8_i32_31 : i32
    %81 = tpu.assume_multiple %80, 8 : i32
    %82 = arith.index_cast %81 : i32 to index
    %c0_32 = arith.constant 0 : index
    %83 = vector.load %arg13[%82, %c0_32] : memref<64x384xf32, #tpu.memory_space<vmem>>, vector<8x384xf32>
    %cst_33 = arith.constant dense<0.000000e+00> : vector<8x256xf32>
    %84 = tpu.matmul %77, %11, %cst_33 {dimension_numbers = #tpu.dot_dimension_numbers<[1], [0], [0], [1], [0, 0, 1, 1], [], []>} : vector<8x128xf32>, vector<128x256xf32>, vector<8x256xf32> -> vector<8x256xf32>
    %85 = vector.extract_strided_slice %83 {offsets = [0, 0], sizes = [8, 128], strides = [1, 1]} : vector<8x384xf32> to vector<8x128xf32>
    %86 = vector.extract_strided_slice %84 {offsets = [0, 0], sizes = [8, 128], strides = [1, 1]} : vector<8x256xf32> to vector<8x128xf32>
    %87 = arith.addf %85, %86 : vector<8x128xf32>
    %88 = arith.negf %87 : vector<8x128xf32>
    %89 = math.exp %88 : vector<8x128xf32>
    %cst_34 = arith.constant 1.000000e+00 : f32
    %90 = vector.broadcast %cst_34 : f32 to vector<8x128xf32>
    %91 = arith.addf %90, %89 : vector<8x128xf32>
    %92 = arith.divf %90, %91 : vector<8x128xf32>
    %93 = vector.extract_strided_slice %83 {offsets = [0, 128], sizes = [8, 128], strides = [1, 1]} : vector<8x384xf32> to vector<8x128xf32>
    %94 = vector.extract_strided_slice %84 {offsets = [0, 128], sizes = [8, 128], strides = [1, 1]} : vector<8x256xf32> to vector<8x128xf32>
    %95 = arith.addf %93, %94 : vector<8x128xf32>
    %96 = arith.negf %95 : vector<8x128xf32>
    %97 = math.exp %96 : vector<8x128xf32>
    %cst_35 = arith.constant 1.000000e+00 : f32
    %98 = vector.broadcast %cst_35 : f32 to vector<8x128xf32>
    %99 = arith.addf %98, %97 : vector<8x128xf32>
    %100 = arith.divf %98, %99 : vector<8x128xf32>
    %101 = vector.extract_strided_slice %83 {offsets = [0, 256], sizes = [8, 128], strides = [1, 1]} : vector<8x384xf32> to vector<8x128xf32>
    %102 = arith.mulf %100, %77 : vector<8x128xf32>
    %cst_36 = arith.constant dense<0.000000e+00> : vector<8x128xf32>
    %103 = tpu.matmul %102, %12, %cst_36 {dimension_numbers = #tpu.dot_dimension_numbers<[1], [0], [0], [1], [0, 0, 1, 1], [], []>} : vector<8x128xf32>, vector<128x128xf32>, vector<8x128xf32> -> vector<8x128xf32>
    %104 = arith.addf %101, %103 : vector<8x128xf32>
    %105 = math.tanh %104 : vector<8x128xf32>
    %106 = arith.mulf %92, %77 : vector<8x128xf32>
    %cst_37 = arith.constant 1.000000e+00 : f32
    %107 = vector.broadcast %cst_37 : f32 to vector<8x128xf32>
    %108 = arith.subf %107, %92 : vector<8x128xf32>
    %109 = arith.mulf %108, %105 : vector<8x128xf32>
    %110 = arith.addf %106, %109 : vector<8x128xf32>
    %111 = arith.index_cast %81 : i32 to index
    %c0_38 = arith.constant 0 : index
    %112 = vector.load %arg14[%111, %c0_38] : memref<64x128xf32, #tpu.memory_space<vmem>>, vector<8x128xf32>
    tpu.vector_store %arg14[%111, %c0_38], %110 {strides = array<i32>} : memref<64x128xf32, #tpu.memory_space<vmem>>, vector<8x128xf32>,
    %c3_i32 = arith.constant 3 : i32
    %c8_i32_39 = arith.constant 8 : i32
    %113 = arith.muli %c3_i32, %c8_i32_39 : i32
    %114 = tpu.assume_multiple %113, 8 : i32
    %115 = arith.index_cast %114 : i32 to index
    %c0_40 = arith.constant 0 : index
    %116 = vector.load %arg13[%115, %c0_40] : memref<64x384xf32, #tpu.memory_space<vmem>>, vector<8x384xf32>
    %cst_41 = arith.constant dense<0.000000e+00> : vector<8x256xf32>
    %117 = tpu.matmul %110, %11, %cst_41 {dimension_numbers = #tpu.dot_dimension_numbers<[1], [0], [0], [1], [0, 0, 1, 1], [], []>} : vector<8x128xf32>, vector<128x256xf32>, vector<8x256xf32> -> vector<8x256xf32>
    %118 = vector.extract_strided_slice %116 {offsets = [0, 0], sizes = [8, 128], strides = [1, 1]} : vector<8x384xf32> to vector<8x128xf32>
    %119 = vector.extract_strided_slice %117 {offsets = [0, 0], sizes = [8, 128], strides = [1, 1]} : vector<8x256xf32> to vector<8x128xf32>
    %120 = arith.addf %118, %119 : vector<8x128xf32>
    %121 = arith.negf %120 : vector<8x128xf32>
    %122 = math.exp %121 : vector<8x128xf32>
    %cst_42 = arith.constant 1.000000e+00 : f32
    %123 = vector.broadcast %cst_42 : f32 to vector<8x128xf32>
    %124 = arith.addf %123, %122 : vector<8x128xf32>
    %125 = arith.divf %123, %124 : vector<8x128xf32>
    %126 = vector.extract_strided_slice %116 {offsets = [0, 128], sizes = [8, 128], strides = [1, 1]} : vector<8x384xf32> to vector<8x128xf32>
    %127 = vector.extract_strided_slice %117 {offsets = [0, 128], sizes = [8, 128], strides = [1, 1]} : vector<8x256xf32> to vector<8x128xf32>
    %128 = arith.addf %126, %127 : vector<8x128xf32>
    %129 = arith.negf %128 : vector<8x128xf32>
    %130 = math.exp %129 : vector<8x128xf32>
    %cst_43 = arith.constant 1.000000e+00 : f32
    %131 = vector.broadcast %cst_43 : f32 to vector<8x128xf32>
    %132 = arith.addf %131, %130 : vector<8x128xf32>
    %133 = arith.divf %131, %132 : vector<8x128xf32>
    %134 = vector.extract_strided_slice %116 {offsets = [0, 256], sizes = [8, 128], strides = [1, 1]} : vector<8x384xf32> to vector<8x128xf32>
    %135 = arith.mulf %133, %110 : vector<8x128xf32>
    %cst_44 = arith.constant dense<0.000000e+00> : vector<8x128xf32>
    %136 = tpu.matmul %135, %12, %cst_44 {dimension_numbers = #tpu.dot_dimension_numbers<[1], [0], [0], [1], [0, 0, 1, 1], [], []>} : vector<8x128xf32>, vector<128x128xf32>, vector<8x128xf32> -> vector<8x128xf32>
    %137 = arith.addf %134, %136 : vector<8x128xf32>
    %138 = math.tanh %137 : vector<8x128xf32>
    %139 = arith.mulf %125, %110 : vector<8x128xf32>
    %cst_45 = arith.constant 1.000000e+00 : f32
    %140 = vector.broadcast %cst_45 : f32 to vector<8x128xf32>
    %141 = arith.subf %140, %125 : vector<8x128xf32>
    %142 = arith.mulf %141, %138 : vector<8x128xf32>
    %143 = arith.addf %139, %142 : vector<8x128xf32>
    %144 = arith.index_cast %114 : i32 to index
    %c0_46 = arith.constant 0 : index
    %145 = vector.load %arg14[%144, %c0_46] : memref<64x128xf32, #tpu.memory_space<vmem>>, vector<8x128xf32>
    tpu.vector_store %arg14[%144, %c0_46], %143 {strides = array<i32>} : memref<64x128xf32, #tpu.memory_space<vmem>>, vector<8x128xf32>,
    %c4_i32 = arith.constant 4 : i32
    %c8_i32_47 = arith.constant 8 : i32
    %146 = arith.muli %c4_i32, %c8_i32_47 : i32
    %147 = tpu.assume_multiple %146, 8 : i32
    %148 = arith.index_cast %147 : i32 to index
    %c0_48 = arith.constant 0 : index
    %149 = vector.load %arg13[%148, %c0_48] : memref<64x384xf32, #tpu.memory_space<vmem>>, vector<8x384xf32>
    %cst_49 = arith.constant dense<0.000000e+00> : vector<8x256xf32>
    %150 = tpu.matmul %143, %11, %cst_49 {dimension_numbers = #tpu.dot_dimension_numbers<[1], [0], [0], [1], [0, 0, 1, 1], [], []>} : vector<8x128xf32>, vector<128x256xf32>, vector<8x256xf32> -> vector<8x256xf32>
    %151 = vector.extract_strided_slice %149 {offsets = [0, 0], sizes = [8, 128], strides = [1, 1]} : vector<8x384xf32> to vector<8x128xf32>
    %152 = vector.extract_strided_slice %150 {offsets = [0, 0], sizes = [8, 128], strides = [1, 1]} : vector<8x256xf32> to vector<8x128xf32>
    %153 = arith.addf %151, %152 : vector<8x128xf32>
    %154 = arith.negf %153 : vector<8x128xf32>
    %155 = math.exp %154 : vector<8x128xf32>
    %cst_50 = arith.constant 1.000000e+00 : f32
    %156 = vector.broadcast %cst_50 : f32 to vector<8x128xf32>
    %157 = arith.addf %156, %155 : vector<8x128xf32>
    %158 = arith.divf %156, %157 : vector<8x128xf32>
    %159 = vector.extract_strided_slice %149 {offsets = [0, 128], sizes = [8, 128], strides = [1, 1]} : vector<8x384xf32> to vector<8x128xf32>
    %160 = vector.extract_strided_slice %150 {offsets = [0, 128], sizes = [8, 128], strides = [1, 1]} : vector<8x256xf32> to vector<8x128xf32>
    %161 = arith.addf %159, %160 : vector<8x128xf32>
    %162 = arith.negf %161 : vector<8x128xf32>
    %163 = math.exp %162 : vector<8x128xf32>
    %cst_51 = arith.constant 1.000000e+00 : f32
    %164 = vector.broadcast %cst_51 : f32 to vector<8x128xf32>
    %165 = arith.addf %164, %163 : vector<8x128xf32>
    %166 = arith.divf %164, %165 : vector<8x128xf32>
    %167 = vector.extract_strided_slice %149 {offsets = [0, 256], sizes = [8, 128], strides = [1, 1]} : vector<8x384xf32> to vector<8x128xf32>
    %168 = arith.mulf %166, %143 : vector<8x128xf32>
    %cst_52 = arith.constant dense<0.000000e+00> : vector<8x128xf32>
    %169 = tpu.matmul %168, %12, %cst_52 {dimension_numbers = #tpu.dot_dimension_numbers<[1], [0], [0], [1], [0, 0, 1, 1], [], []>} : vector<8x128xf32>, vector<128x128xf32>, vector<8x128xf32> -> vector<8x128xf32>
    %170 = arith.addf %167, %169 : vector<8x128xf32>
    %171 = math.tanh %170 : vector<8x128xf32>
    %172 = arith.mulf %158, %143 : vector<8x128xf32>
    %cst_53 = arith.constant 1.000000e+00 : f32
    %173 = vector.broadcast %cst_53 : f32 to vector<8x128xf32>
    %174 = arith.subf %173, %158 : vector<8x128xf32>
    %175 = arith.mulf %174, %171 : vector<8x128xf32>
    %176 = arith.addf %172, %175 : vector<8x128xf32>
    %177 = arith.index_cast %147 : i32 to index
    %c0_54 = arith.constant 0 : index
    %178 = vector.load %arg14[%177, %c0_54] : memref<64x128xf32, #tpu.memory_space<vmem>>, vector<8x128xf32>
    tpu.vector_store %arg14[%177, %c0_54], %176 {strides = array<i32>} : memref<64x128xf32, #tpu.memory_space<vmem>>, vector<8x128xf32>,
    %c5_i32 = arith.constant 5 : i32
    %c8_i32_55 = arith.constant 8 : i32
    %179 = arith.muli %c5_i32, %c8_i32_55 : i32
    %180 = tpu.assume_multiple %179, 8 : i32
    %181 = arith.index_cast %180 : i32 to index
    %c0_56 = arith.constant 0 : index
    %182 = vector.load %arg13[%181, %c0_56] : memref<64x384xf32, #tpu.memory_space<vmem>>, vector<8x384xf32>
    %cst_57 = arith.constant dense<0.000000e+00> : vector<8x256xf32>
    %183 = tpu.matmul %176, %11, %cst_57 {dimension_numbers = #tpu.dot_dimension_numbers<[1], [0], [0], [1], [0, 0, 1, 1], [], []>} : vector<8x128xf32>, vector<128x256xf32>, vector<8x256xf32> -> vector<8x256xf32>
    %184 = vector.extract_strided_slice %182 {offsets = [0, 0], sizes = [8, 128], strides = [1, 1]} : vector<8x384xf32> to vector<8x128xf32>
    %185 = vector.extract_strided_slice %183 {offsets = [0, 0], sizes = [8, 128], strides = [1, 1]} : vector<8x256xf32> to vector<8x128xf32>
    %186 = arith.addf %184, %185 : vector<8x128xf32>
    %187 = arith.negf %186 : vector<8x128xf32>
    %188 = math.exp %187 : vector<8x128xf32>
    %cst_58 = arith.constant 1.000000e+00 : f32
    %189 = vector.broadcast %cst_58 : f32 to vector<8x128xf32>
    %190 = arith.addf %189, %188 : vector<8x128xf32>
    %191 = arith.divf %189, %190 : vector<8x128xf32>
    %192 = vector.extract_strided_slice %182 {offsets = [0, 128], sizes = [8, 128], strides = [1, 1]} : vector<8x384xf32> to vector<8x128xf32>
    %193 = vector.extract_strided_slice %183 {offsets = [0, 128], sizes = [8, 128], strides = [1, 1]} : vector<8x256xf32> to vector<8x128xf32>
    %194 = arith.addf %192, %193 : vector<8x128xf32>
    %195 = arith.negf %194 : vector<8x128xf32>
    %196 = math.exp %195 : vector<8x128xf32>
    %cst_59 = arith.constant 1.000000e+00 : f32
    %197 = vector.broadcast %cst_59 : f32 to vector<8x128xf32>
    %198 = arith.addf %197, %196 : vector<8x128xf32>
    %199 = arith.divf %197, %198 : vector<8x128xf32>
    %200 = vector.extract_strided_slice %182 {offsets = [0, 256], sizes = [8, 128], strides = [1, 1]} : vector<8x384xf32> to vector<8x128xf32>
    %201 = arith.mulf %199, %176 : vector<8x128xf32>
    %cst_60 = arith.constant dense<0.000000e+00> : vector<8x128xf32>
    %202 = tpu.matmul %201, %12, %cst_60 {dimension_numbers = #tpu.dot_dimension_numbers<[1], [0], [0], [1], [0, 0, 1, 1], [], []>} : vector<8x128xf32>, vector<128x128xf32>, vector<8x128xf32> -> vector<8x128xf32>
    %203 = arith.addf %200, %202 : vector<8x128xf32>
    %204 = math.tanh %203 : vector<8x128xf32>
    %205 = arith.mulf %191, %176 : vector<8x128xf32>
    %cst_61 = arith.constant 1.000000e+00 : f32
    %206 = vector.broadcast %cst_61 : f32 to vector<8x128xf32>
    %207 = arith.subf %206, %191 : vector<8x128xf32>
    %208 = arith.mulf %207, %204 : vector<8x128xf32>
    %209 = arith.addf %205, %208 : vector<8x128xf32>
    %210 = arith.index_cast %180 : i32 to index
    %c0_62 = arith.constant 0 : index
    %211 = vector.load %arg14[%210, %c0_62] : memref<64x128xf32, #tpu.memory_space<vmem>>, vector<8x128xf32>
    tpu.vector_store %arg14[%210, %c0_62], %209 {strides = array<i32>} : memref<64x128xf32, #tpu.memory_space<vmem>>, vector<8x128xf32>,
    %c6_i32 = arith.constant 6 : i32
    %c8_i32_63 = arith.constant 8 : i32
    %212 = arith.muli %c6_i32, %c8_i32_63 : i32
    %213 = tpu.assume_multiple %212, 8 : i32
    %214 = arith.index_cast %213 : i32 to index
    %c0_64 = arith.constant 0 : index
    %215 = vector.load %arg13[%214, %c0_64] : memref<64x384xf32, #tpu.memory_space<vmem>>, vector<8x384xf32>
    %cst_65 = arith.constant dense<0.000000e+00> : vector<8x256xf32>
    %216 = tpu.matmul %209, %11, %cst_65 {dimension_numbers = #tpu.dot_dimension_numbers<[1], [0], [0], [1], [0, 0, 1, 1], [], []>} : vector<8x128xf32>, vector<128x256xf32>, vector<8x256xf32> -> vector<8x256xf32>
    %217 = vector.extract_strided_slice %215 {offsets = [0, 0], sizes = [8, 128], strides = [1, 1]} : vector<8x384xf32> to vector<8x128xf32>
    %218 = vector.extract_strided_slice %216 {offsets = [0, 0], sizes = [8, 128], strides = [1, 1]} : vector<8x256xf32> to vector<8x128xf32>
    %219 = arith.addf %217, %218 : vector<8x128xf32>
    %220 = arith.negf %219 : vector<8x128xf32>
    %221 = math.exp %220 : vector<8x128xf32>
    %cst_66 = arith.constant 1.000000e+00 : f32
    %222 = vector.broadcast %cst_66 : f32 to vector<8x128xf32>
    %223 = arith.addf %222, %221 : vector<8x128xf32>
    %224 = arith.divf %222, %223 : vector<8x128xf32>
    %225 = vector.extract_strided_slice %215 {offsets = [0, 128], sizes = [8, 128], strides = [1, 1]} : vector<8x384xf32> to vector<8x128xf32>
    %226 = vector.extract_strided_slice %216 {offsets = [0, 128], sizes = [8, 128], strides = [1, 1]} : vector<8x256xf32> to vector<8x128xf32>
    %227 = arith.addf %225, %226 : vector<8x128xf32>
    %228 = arith.negf %227 : vector<8x128xf32>
    %229 = math.exp %228 : vector<8x128xf32>
    %cst_67 = arith.constant 1.000000e+00 : f32
    %230 = vector.broadcast %cst_67 : f32 to vector<8x128xf32>
    %231 = arith.addf %230, %229 : vector<8x128xf32>
    %232 = arith.divf %230, %231 : vector<8x128xf32>
    %233 = vector.extract_strided_slice %215 {offsets = [0, 256], sizes = [8, 128], strides = [1, 1]} : vector<8x384xf32> to vector<8x128xf32>
    %234 = arith.mulf %232, %209 : vector<8x128xf32>
    %cst_68 = arith.constant dense<0.000000e+00> : vector<8x128xf32>
    %235 = tpu.matmul %234, %12, %cst_68 {dimension_numbers = #tpu.dot_dimension_numbers<[1], [0], [0], [1], [0, 0, 1, 1], [], []>} : vector<8x128xf32>, vector<128x128xf32>, vector<8x128xf32> -> vector<8x128xf32>
    %236 = arith.addf %233, %235 : vector<8x128xf32>
    %237 = math.tanh %236 : vector<8x128xf32>
    %238 = arith.mulf %224, %209 : vector<8x128xf32>
    %cst_69 = arith.constant 1.000000e+00 : f32
    %239 = vector.broadcast %cst_69 : f32 to vector<8x128xf32>
    %240 = arith.subf %239, %224 : vector<8x128xf32>
    %241 = arith.mulf %240, %237 : vector<8x128xf32>
    %242 = arith.addf %238, %241 : vector<8x128xf32>
    %243 = arith.index_cast %213 : i32 to index
    %c0_70 = arith.constant 0 : index
    %244 = vector.load %arg14[%243, %c0_70] : memref<64x128xf32, #tpu.memory_space<vmem>>, vector<8x128xf32>
    tpu.vector_store %arg14[%243, %c0_70], %242 {strides = array<i32>} : memref<64x128xf32, #tpu.memory_space<vmem>>, vector<8x128xf32>,
    %c7_i32 = arith.constant 7 : i32
    %c8_i32_71 = arith.constant 8 : i32
    %245 = arith.muli %c7_i32, %c8_i32_71 : i32
    %246 = tpu.assume_multiple %245, 8 : i32
    %247 = arith.index_cast %246 : i32 to index
    %c0_72 = arith.constant 0 : index
    %248 = vector.load %arg13[%247, %c0_72] : memref<64x384xf32, #tpu.memory_space<vmem>>, vector<8x384xf32>
    %cst_73 = arith.constant dense<0.000000e+00> : vector<8x256xf32>
    %249 = tpu.matmul %242, %11, %cst_73 {dimension_numbers = #tpu.dot_dimension_numbers<[1], [0], [0], [1], [0, 0, 1, 1], [], []>} : vector<8x128xf32>, vector<128x256xf32>, vector<8x256xf32> -> vector<8x256xf32>
    %250 = vector.extract_strided_slice %248 {offsets = [0, 0], sizes = [8, 128], strides = [1, 1]} : vector<8x384xf32> to vector<8x128xf32>
    %251 = vector.extract_strided_slice %249 {offsets = [0, 0], sizes = [8, 128], strides = [1, 1]} : vector<8x256xf32> to vector<8x128xf32>
    %252 = arith.addf %250, %251 : vector<8x128xf32>
    %253 = arith.negf %252 : vector<8x128xf32>
    %254 = math.exp %253 : vector<8x128xf32>
    %cst_74 = arith.constant 1.000000e+00 : f32
    %255 = vector.broadcast %cst_74 : f32 to vector<8x128xf32>
    %256 = arith.addf %255, %254 : vector<8x128xf32>
    %257 = arith.divf %255, %256 : vector<8x128xf32>
    %258 = vector.extract_strided_slice %248 {offsets = [0, 128], sizes = [8, 128], strides = [1, 1]} : vector<8x384xf32> to vector<8x128xf32>
    %259 = vector.extract_strided_slice %249 {offsets = [0, 128], sizes = [8, 128], strides = [1, 1]} : vector<8x256xf32> to vector<8x128xf32>
    %260 = arith.addf %258, %259 : vector<8x128xf32>
    %261 = arith.negf %260 : vector<8x128xf32>
    %262 = math.exp %261 : vector<8x128xf32>
    %cst_75 = arith.constant 1.000000e+00 : f32
    %263 = vector.broadcast %cst_75 : f32 to vector<8x128xf32>
    %264 = arith.addf %263, %262 : vector<8x128xf32>
    %265 = arith.divf %263, %264 : vector<8x128xf32>
    %266 = vector.extract_strided_slice %248 {offsets = [0, 256], sizes = [8, 128], strides = [1, 1]} : vector<8x384xf32> to vector<8x128xf32>
    %267 = arith.mulf %265, %242 : vector<8x128xf32>
    %cst_76 = arith.constant dense<0.000000e+00> : vector<8x128xf32>
    %268 = tpu.matmul %267, %12, %cst_76 {dimension_numbers = #tpu.dot_dimension_numbers<[1], [0], [0], [1], [0, 0, 1, 1], [], []>} : vector<8x128xf32>, vector<128x128xf32>, vector<8x128xf32> -> vector<8x128xf32>
    %269 = arith.addf %266, %268 : vector<8x128xf32>
    %270 = math.tanh %269 : vector<8x128xf32>
    %271 = arith.mulf %257, %242 : vector<8x128xf32>
    %cst_77 = arith.constant 1.000000e+00 : f32
    %272 = vector.broadcast %cst_77 : f32 to vector<8x128xf32>
    %273 = arith.subf %272, %257 : vector<8x128xf32>
    %274 = arith.mulf %273, %270 : vector<8x128xf32>
    %275 = arith.addf %271, %274 : vector<8x128xf32>
    %276 = arith.index_cast %246 : i32 to index
    %c0_78 = arith.constant 0 : index
    %277 = vector.load %arg14[%276, %c0_78] : memref<64x128xf32, #tpu.memory_space<vmem>>, vector<8x128xf32>
    tpu.vector_store %arg14[%276, %c0_78], %275 {strides = array<i32>} : memref<64x128xf32, #tpu.memory_space<vmem>>, vector<8x128xf32>,
    %c8_i32_79 = arith.constant 8 : i32
    %c0_80 = arith.constant 0 : index
    %c0_81 = arith.constant 0 : index
    %278 = vector.load %arg12[%c0_80, %c0_81] : memref<8x128xf32, #tpu.memory_space<vmem>>, vector<8x128xf32>
    tpu.vector_store %arg12[%c0_80, %c0_81], %275 {strides = array<i32>} : memref<8x128xf32, #tpu.memory_space<vmem>>, vector<8x128xf32>,
    %c0_82 = arith.constant 0 : index
    %c0_83 = arith.constant 0 : index
    %279 = vector.load %arg11[%c0_82, %c0_83] : memref<8x128xf32, #tpu.memory_space<vmem>>, vector<8x128xf32>
    tpu.vector_store %arg11[%c0_82, %c0_83], %275 {strides = array<i32>} : memref<8x128xf32, #tpu.memory_space<vmem>>, vector<8x128xf32>,
    %c0_84 = arith.constant 0 : index
    %c0_85 = arith.constant 0 : index
    %280 = vector.load %arg14[%c0_84, %c0_85] : memref<64x128xf32, #tpu.memory_space<vmem>>, vector<64x128xf32>
    %c0_86 = arith.constant 0 : index
    %c0_87 = arith.constant 0 : index
    %281 = vector.load %arg8[%c0_86, %c0_87] : memref<128x128xf32, #tpu.memory_space<vmem>>, vector<128x128xf32>
    %cst_88 = arith.constant dense<0.000000e+00> : vector<64x128xf32>
    %282 = tpu.matmul %280, %281, %cst_88 {dimension_numbers = #tpu.dot_dimension_numbers<[1], [0], [0], [1], [0, 0, 1, 1], [], []>} : vector<64x128xf32>, vector<128x128xf32>, vector<64x128xf32> -> vector<64x128xf32>
    %c0_89 = arith.constant 0 : index
    %c0_90 = arith.constant 0 : index
    %283 = vector.load %arg9[%c0_89, %c0_90] : memref<1x128xf32, #tpu.memory_space<vmem>>, vector<1x128xf32>
    %284 = vector.broadcast %283 : vector<1x128xf32> to vector<64x128xf32>
    %285 = arith.addf %282, %284 : vector<64x128xf32>
    %286 = vector.shape_cast %285 : vector<64x128xf32> to vector<8x8x128xf32>
    %c0_91 = arith.constant 0 : index
    %c0_92 = arith.constant 0 : index
    %c0_93 = arith.constant 0 : index
    %287 = vector.load %arg10[%c0_91, %c0_92, %c0_93] : memref<8x8x128xf32, #tpu.memory_space<vmem>>, vector<8x8x128xf32>
    tpu.vector_store %arg10[%c0_91, %c0_92, %c0_93], %286 {strides = array<i32>} : memref<8x8x128xf32, #tpu.memory_space<vmem>>, vector<8x8x128xf32>,
    return
  }
  func.func @transform_0(%arg0: i32, %arg1: i32) -> (i32, i32, i32) {
    %c0_i32 = arith.constant 0 : i32
    %c0_i32_0 = arith.constant 0 : i32
    return %arg1, %arg0, %c0_i32 : i32, i32, i32
  }
  func.func @transform_1(%arg0: i32, %arg1: i32) -> (i32, i32) {
    %c0_i32 = arith.constant 0 : i32
    %c0_i32_0 = arith.constant 0 : i32
    return %arg0, %c0_i32 : i32, i32
  }
  func.func @transform_2(%arg0: i32, %arg1: i32) -> (i32, i32) {
    %c0_i32 = arith.constant 0 : i32
    %c0_i32_0 = arith.constant 0 : i32
    %c0_i32_1 = arith.constant 0 : i32
    return %c0_i32, %c0_i32_0 : i32, i32
  }
  func.func @transform_3(%arg0: i32, %arg1: i32) -> (i32, i32) {
    %c0_i32 = arith.constant 0 : i32
    %c0_i32_0 = arith.constant 0 : i32
    %c0_i32_1 = arith.constant 0 : i32
    return %c0_i32, %c0_i32_0 : i32, i32
  }
  func.func @transform_4(%arg0: i32, %arg1: i32) -> (i32, i32) {
    %c0_i32 = arith.constant 0 : i32
    %c0_i32_0 = arith.constant 0 : i32
    %c0_i32_1 = arith.constant 0 : i32
    return %c0_i32, %c0_i32_0 : i32, i32
  }
  func.func @transform_5(%arg0: i32, %arg1: i32) -> (i32, i32) {
    %c0_i32 = arith.constant 0 : i32
    %c0_i32_0 = arith.constant 0 : i32
    %c0_i32_1 = arith.constant 0 : i32
    return %c0_i32, %c0_i32_0 : i32, i32
  }
  func.func @transform_6(%arg0: i32, %arg1: i32) -> (i32, i32) {
    %c0_i32 = arith.constant 0 : i32
    %c0_i32_0 = arith.constant 0 : i32
    %c0_i32_1 = arith.constant 0 : i32
    return %c0_i32, %c0_i32_0 : i32, i32
  }
  func.func @transform_7(%arg0: i32, %arg1: i32) -> (i32, i32) {
    %c0_i32 = arith.constant 0 : i32
    %c0_i32_0 = arith.constant 0 : i32
    %c0_i32_1 = arith.constant 0 : i32
    return %c0_i32, %c0_i32_0 : i32, i32
  }
  func.func @transform_8(%arg0: i32, %arg1: i32) -> (i32, i32, i32) {
    %c0_i32 = arith.constant 0 : i32
    %c0_i32_0 = arith.constant 0 : i32
    return %arg1, %arg0, %c0_i32 : i32, i32, i32
  }
  func.func @transform_9(%arg0: i32, %arg1: i32) -> (i32, i32) {
    %c0_i32 = arith.constant 0 : i32
    %c0_i32_0 = arith.constant 0 : i32
    return %arg0, %c0_i32 : i32, i32
  }
}

</mosaic_0001>

<llo_original>
// kernel: tpu_custom_call.1
$region0: #{tpu_custom_call.1}
  #allocation0 [shape = 'u32[]', space=smem, size = 0x4, offset = 0x4, fixed_abs, tag = 'smem constant byte address 0x4 - core index']
  #allocation1 [shape = 'u32[144,128]{1,0:T(1,128)}', space=vmem, size = 0x12000, scoped, tag = 'internal scratch']
  #allocation2 [shape = 'f32[8,128]{1,0:T(8,128)}', space=vmem, size = 0x1000, scoped, tag = 'scratch operand']
  #allocation3 [shape = 'f32[64,384]{1,0:T(8,128)}', space=vmem, size = 0x18000, scoped, tag = 'scratch operand']
  #allocation4 [shape = 'f32[64,128]{1,0:T(8,128)}', space=vmem, size = 0x8000, scoped, tag = 'scratch operand']
  %s0 = inlined_call_operand.hbm [shape: f32[8,8,128], index: 0, kind: input, shape index: {}]
  %s1 = inlined_call_operand.hbm [shape: f32[8,128], index: 1, kind: input, shape index: {}]
  %s2 = inlined_call_operand.hbm [shape: f32[128,384], index: 2, kind: input, shape index: {}]
  %s3 = inlined_call_operand.vmem [shape: f32[1,384], index: 3, kind: input, shape index: {}]
  %s4 = inlined_call_operand.hbm [shape: f32[128,256], index: 4, kind: input, shape index: {}]
  %s5 = inlined_call_operand.hbm [shape: f32[128,128], index: 5, kind: input, shape index: {}]
  %s6 = inlined_call_operand.hbm [shape: f32[128,128], index: 6, kind: input, shape index: {}]
  %s7 = inlined_call_operand.vmem [shape: f32[1,128], index: 7, kind: input, shape index: {}]
  %s8 = inlined_call_operand.hbm [shape: f32[8,8,128], index: 8, kind: output, shape index: {0}]
  %s9 = inlined_call_operand.hbm [shape: f32[8,128], index: 9, kind: output, shape index: {1}]
  %10 = xla_tuple %s8, %s9
  %s11 = sld [smem:[#allocation0]]
  $region78: #{tpu_custom_call.1} parent=0
    _
  %s13 = ssub.s32 1, %s11
  %s14 = scalar_select 0, %s13, %s11
  $region1: #{tpu_custom_call.1} parent=0
    #allocation5 [shape = 'u8[32768]{0}', space=vmem, size = 0x8000, scoped, tag = 'input window, operand 0, single buffered']
    #allocation6 [shape = 's32[1]{0}', space=sflag, size = 0x4, scoped, tag = 'scoped memory for tpu_custom_call.1']
    #allocation7 [shape = 's32[1]{0}', space=sflag, size = 0x4, scoped, tag = 'scoped memory for tpu_custom_call.1']
    #allocation8 [shape = 'u8[4096]{0}', space=vmem, size = 0x1000, scoped, tag = 'input window, operand 1, single buffered']
    #allocation9 [shape = 's32[1]{0}', space=sflag, size = 0x4, scoped, tag = 'scoped memory for tpu_custom_call.1']
    #allocation10 [shape = 'u8[196608]{0}', space=vmem, size = 0x30000, scoped, tag = 'input window, operand 2, single buffered']
    #allocation11 [shape = 'u8[131072]{0}', space=vmem, size = 0x20000, scoped, tag = 'input window, operand 4, single buffered']
    #allocation12 [shape = 's32[1]{0}', space=sflag, size = 0x4, scoped, tag = 'scoped memory for tpu_custom_call.1']
    #allocation13 [shape = 'u8[65536]{0}', space=vmem, size = 0x10000, scoped, tag = 'input window, operand 5, single buffered']
    #allocation14 [shape = 'u8[65536]{0}', space=vmem, size = 0x10000, scoped, tag = 'input window, operand 6, single buffered']
    #allocation15 [shape = 's32[1]{0}', space=sflag, size = 0x4, scoped, tag = 'scoped memory for tpu_custom_call.1']
    #allocation16 [shape = 'u8[32768]{0}', space=vmem, size = 0x8000, scoped, tag = 'output window, operand 0, single buffered']
    #allocation17 [shape = 'u8[4096]{0}', space=vmem, size = 0x1000, scoped, tag = 'output window, operand 1, single buffered']
    #allocation18 [shape = 's32[1]{0}', space=sflag, size = 0x4, scoped, tag = 'scoped memory for tpu_custom_call.1']
    %15 = vsyncpa [#allocation6], 0
    %16 = vsyncpa [#allocation9], 0
    %17 = vsyncpa [#allocation12], 0
    %18 = vsyncpa [#allocation15], 0
    %19 = vsyncpa [#allocation7], 0
    %20 = vsyncpa [#allocation18], 0
    // Predicated region
    $region2: #{tpu_custom_call.1} parent=1 // pred_check
      _
    $region3: #{tpu_custom_call.1} parent=1 // pred_check_branch
      %22 = sbr.rel (0) target = $region5
    $region4: #{tpu_custom_call.1} parent=1 // pred_region
      %s24 = ssub.s32 1024, 1024
      %25 = vsyncadd [#allocation6], %s24
      %s26 = sshll.u32 [#allocation5], 4
      %s27 = int_to_ptr.vmem [resolvable:$true] %s26
      %32 = dma.hbm_to_vmem [thread:$0]  %s0, 1024, %s27, [#allocation6], 128, 128, 8
    $region5: #{tpu_custom_call.1} parent=1 // pred_fallthru
      _
    // Predicated region
    $region6: #{tpu_custom_call.1} parent=1 // pred_check
      _
    $region7: #{tpu_custom_call.1} parent=1 // pred_check_branch
      %34 = sbr.rel (0) target = $region9
    $region8: #{tpu_custom_call.1} parent=1 // pred_region
      %s36 = ssub.s32 128, 128
      %37 = vsyncadd [#allocation9], %s36
      %s39 = sshll.u32 [#allocation8], 4
      %s40 = int_to_ptr.vmem [resolvable:$true] %s39
      %42 = dma.hbm_to_vmem [thread:$0]  %s1, 128, %s40, [#allocation9]
    $region9: #{tpu_custom_call.1} parent=1 // pred_fallthru
      _
    // Predicated region
    $region10: #{tpu_custom_call.1} parent=1 // pred_check
      _
    $region11: #{tpu_custom_call.1} parent=1 // pred_check_branch
      %44 = sbr.rel (0) target = $region13
    $region12: #{tpu_custom_call.1} parent=1 // pred_region
      %s46 = ssub.s32 6144, 6144
      %47 = vsyncadd [#allocation9], %s46
      %s48 = sshll.u32 [#allocation10], 4
      %s49 = int_to_ptr.vmem [resolvable:$true] %s48
      %54 = dma.hbm_to_vmem [thread:$0]  %s2, 6144, %s49, [#allocation9], 384, 384, 24
    $region13: #{tpu_custom_call.1} parent=1 // pred_fallthru
      _
    // Predicated region
    $region14: #{tpu_custom_call.1} parent=1 // pred_check
      _
    $region15: #{tpu_custom_call.1} parent=1 // pred_check_branch
      %56 = sbr.rel (0) target = $region17
    $region16: #{tpu_custom_call.1} parent=1 // pred_region
      _
    $region17: #{tpu_custom_call.1} parent=1 // pred_fallthru
      _
    // Predicated region
    $region18: #{tpu_custom_call.1} parent=1 // pred_check
      _
    $region19: #{tpu_custom_call.1} parent=1 // pred_check_branch
      %58 = sbr.rel (0) target = $region21
    $region20: #{tpu_custom_call.1} parent=1 // pred_region
      %s60 = ssub.s32 4096, 4096
      %61 = vsyncadd [#allocation12], %s60
      %s62 = sshll.u32 [#allocation11], 4
      %s63 = int_to_ptr.vmem [resolvable:$true] %s62
      %68 = dma.hbm_to_vmem [thread:$0]  %s4, 4096, %s63, [#allocation12], 256, 256, 16
    $region21: #{tpu_custom_call.1} parent=1 // pred_fallthru
      _
    // Predicated region
    $region22: #{tpu_custom_call.1} parent=1 // pred_check
      _
    $region23: #{tpu_custom_call.1} parent=1 // pred_check_branch
      %70 = sbr.rel (0) target = $region25
    $region24: #{tpu_custom_call.1} parent=1 // pred_region
      %s72 = ssub.s32 2048, 2048
      %73 = vsyncadd [#allocation12], %s72
      %s74 = sshll.u32 [#allocation13], 4
      %s75 = int_to_ptr.vmem [resolvable:$true] %s74
      %80 = dma.hbm_to_vmem [thread:$0]  %s5, 2048, %s75, [#allocation12], 128, 128, 8
    $region25: #{tpu_custom_call.1} parent=1 // pred_fallthru
      _
    // Predicated region
    $region26: #{tpu_custom_call.1} parent=1 // pred_check
      _
    $region27: #{tpu_custom_call.1} parent=1 // pred_check_branch
      %82 = sbr.rel (0) target = $region29
    $region28: #{tpu_custom_call.1} parent=1 // pred_region
      %s84 = ssub.s32 2048, 2048
      %85 = vsyncadd [#allocation15], %s84
      %s86 = sshll.u32 [#allocation14], 4
      %s87 = int_to_ptr.vmem [resolvable:$true] %s86
      %92 = dma.hbm_to_vmem [thread:$0]  %s6, 2048, %s87, [#allocation15], 128, 128, 8
    $region29: #{tpu_custom_call.1} parent=1 // pred_fallthru
      _
    // Predicated region
    $region30: #{tpu_custom_call.1} parent=1 // pred_check
      _
    $region31: #{tpu_custom_call.1} parent=1 // pred_check_branch
      %94 = sbr.rel (0) target = $region33
    $region32: #{tpu_custom_call.1} parent=1 // pred_region
      _
    $region33: #{tpu_custom_call.1} parent=1 // pred_fallthru
      _
    // Predicated region
    $region34: #{tpu_custom_call.1} parent=1 // pred_check
      _
    $region35: #{tpu_custom_call.1} parent=1 // pred_check_branch
      %96 = sbr.rel (0) target = $region37
    $region36: #{tpu_custom_call.1} parent=1 // pred_region
      %97 = dma.done [#allocation6], 1024
    $region37: #{tpu_custom_call.1} parent=1 // pred_fallthru
      _
    // Predicated region
    $region38: #{tpu_custom_call.1} parent=1 // pred_check
      _
    $region39: #{tpu_custom_call.1} parent=1 // pred_check_branch
      %99 = sbr.rel (0) target = $region41
    $region40: #{tpu_custom_call.1} parent=1 // pred_region
      %100 = dma.done [#allocation9], 128
    $region41: #{tpu_custom_call.1} parent=1 // pred_fallthru
      _
    // Predicated region
    $region42: #{tpu_custom_call.1} parent=1 // pred_check
      _
    $region43: #{tpu_custom_call.1} parent=1 // pred_check_branch
      %102 = sbr.rel (0) target = $region45
    $region44: #{tpu_custom_call.1} parent=1 // pred_region
      %103 = dma.done [#allocation9], 6144
    $region45: #{tpu_custom_call.1} parent=1 // pred_fallthru
      _
    // Predicated region
    $region46: #{tpu_custom_call.1} parent=1 // pred_check
      _
    $region47: #{tpu_custom_call.1} parent=1 // pred_check_branch
      %105 = sbr.rel (0) target = $region49
    $region48: #{tpu_custom_call.1} parent=1 // pred_region
      %106 = dma.done [#allocation12], 4096
    $region49: #{tpu_custom_call.1} parent=1 // pred_fallthru
      _
    // Predicated region
    $region50: #{tpu_custom_call.1} parent=1 // pred_check
      _
    $region51: #{tpu_custom_call.1} parent=1 // pred_check_branch
      %108 = sbr.rel (0) target = $region53
    $region52: #{tpu_custom_call.1} parent=1 // pred_region
      %109 = dma.done [#allocation12], 2048
    $region53: #{tpu_custom_call.1} parent=1 // pred_fallthru
      _
    // Predicated region
    $region54: #{tpu_custom_call.1} parent=1 // pred_check
      _
    $region55: #{tpu_custom_call.1} parent=1 // pred_check_branch
      %111 = sbr.rel (0) target = $region57
    $region56: #{tpu_custom_call.1} parent=1 // pred_region
      %112 = dma.done [#allocation15], 2048
    $region57: #{tpu_custom_call.1} parent=1 // pred_fallthru
      _
    %p113 = scmp.eq.s32.totalorder 0, 0
    // Predicated region
    $region58: #{tpu_custom_call.1} parent=1 // pred_check
      %p114 = pneg %p113
    $region59: #{tpu_custom_call.1} parent=1 // pred_check_branch
      %116 = sbr.rel (%p114) target = $region61
    $region60: #{tpu_custom_call.1} parent=1 // pred_region
      %v117 = vld [vmem:[#allocation8] sm:$0xff]
      %118 = vst [vmem:[#allocation2] sm:$0xff] %v117
    $region61: #{tpu_custom_call.1} parent=1 // pred_fallthru
      _
    %v119 = vld [vmem:[#allocation5] sm:$0xff]
    %v120 = vld [vmem:[#allocation5 + $0x8] sm:$0xff]
    %v121 = vld [vmem:[#allocation5 + $0x10] sm:$0xff]
    %v122 = vld [vmem:[#allocation5 + $0x18] sm:$0xff]
    %v123 = vld [vmem:[#allocation5 + $0x20] sm:$0xff]
    %v124 = vld [vmem:[#allocation5 + $0x28] sm:$0xff]
    %v125 = vld [vmem:[#allocation5 + $0x30] sm:$0xff]
    %v126 = vld [vmem:[#allocation5 + $0x38] sm:$0xff]
    %v127 = vld [vmem:[#allocation10] sm:$0xff]
    %v128 = vld [vmem:[#allocation10 + $0x8] sm:$0xff]
    %v129 = vld [vmem:[#allocation10 + $0x10] sm:$0xff]
    %v130 = vld [vmem:[#allocation10 + $0x18] sm:$0xff]
    %v131 = vld [vmem:[#allocation10 + $0x20] sm:$0xff]
    %v132 = vld [vmem:[#allocation10 + $0x28] sm:$0xff]
    %v133 = vld [vmem:[#allocation10 + $0x30] sm:$0xff]
    %v134 = vld [vmem:[#allocation10 + $0x38] sm:$0xff]
    %v135 = vld [vmem:[#allocation10 + $0x40] sm:$0xff]
    %v136 = vld [vmem:[#allocation10 + $0x48] sm:$0xff]
    %v137 = vld [vmem:[#allocation10 + $0x50] sm:$0xff]
    %v138 = vld [vmem:[#allocation10 + $0x58] sm:$0xff]
    %v139 = vld [vmem:[#allocation10 + $0x60] sm:$0xff]
    %v140 = vld [vmem:[#allocation10 + $0x68] sm:$0xff]
    %v141 = vld [vmem:[#allocation10 + $0x70] sm:$0xff]
    %v142 = vld [vmem:[#allocation10 + $0x78] sm:$0xff]
    %v143 = vld [vmem:[#allocation10 + $0x80] sm:$0xff]
    %v144 = vld [vmem:[#allocation10 + $0x88] sm:$0xff]
    %v145 = vld [vmem:[#allocation10 + $0x90] sm:$0xff]
    %v146 = vld [vmem:[#allocation10 + $0x98] sm:$0xff]
    %v147 = vld [vmem:[#allocation10 + $0xa0] sm:$0xff]
    %v148 = vld [vmem:[#allocation10 + $0xa8] sm:$0xff]
    %v149 = vld [vmem:[#allocation10 + $0xb0] sm:$0xff]
    %v150 = vld [vmem:[#allocation10 + $0xb8] sm:$0xff]
    %v151 = vld [vmem:[#allocation10 + $0xc0] sm:$0xff]
    %v152 = vld [vmem:[#allocation10 + $0xc8] sm:$0xff]
    %v153 = vld [vmem:[#allocation10 + $0xd0] sm:$0xff]
    %v154 = vld [vmem:[#allocation10 + $0xd8] sm:$0xff]
    %v155 = vld [vmem:[#allocation10 + $0xe0] sm:$0xff]
    %v156 = vld [vmem:[#allocation10 + $0xe8] sm:$0xff]
    %v157 = vld [vmem:[#allocation10 + $0xf0] sm:$0xff]
    %v158 = vld [vmem:[#allocation10 + $0xf8] sm:$0xff]
    %v159 = vld [vmem:[#allocation10 + $0x100] sm:$0xff]
    %v160 = vld [vmem:[#allocation10 + $0x108] sm:$0xff]
    %v161 = vld [vmem:[#allocation10 + $0x110] sm:$0xff]
    %v162 = vld [vmem:[#allocation10 + $0x118] sm:$0xff]
    %v163 = vld [vmem:[#allocation10 + $0x120] sm:$0xff]
    %v164 = vld [vmem:[#allocation10 + $0x128] sm:$0xff]
    %v165 = vld [vmem:[#allocation10 + $0x130] sm:$0xff]
    %v166 = vld [vmem:[#allocation10 + $0x138] sm:$0xff]
    %v167 = vld [vmem:[#allocation10 + $0x140] sm:$0xff]
    %v168 = vld [vmem:[#allocation10 + $0x148] sm:$0xff]
    %v169 = vld [vmem:[#allocation10 + $0x150] sm:$0xff]
    %v170 = vld [vmem:[#allocation10 + $0x158] sm:$0xff]
    %v171 = vld [vmem:[#allocation10 + $0x160] sm:$0xff]
    %v172 = vld [vmem:[#allocation10 + $0x168] sm:$0xff]
    %v173 = vld [vmem:[#allocation10 + $0x170] sm:$0xff]
    %v174 = vld [vmem:[#allocation10 + $0x178] sm:$0xff]
    %v175 = vld [vmem:[%s3] sm:$0x7]
    %v177 = vlaneseq
    %v178 = vshrl.u32 %v177, 7
    %v179 = vsub.s32 0, %v178
    %v180 = vrot.slane %v175, %v179
    %v181 = vlaneseq
    %v182 = vshrl.u32 %v181, 7
    %v183 = vsub.s32 1, %v182
    %v184 = vrot.slane %v175, %v183
    %v185 = vlaneseq
    %v186 = vshrl.u32 %v185, 7
    %v187 = vsub.s32 2, %v186
    %v188 = vrot.slane %v175, %v187
    %192 = vmatprep.subr.mxu0 %v128
    %193 = vmatpush1.msra.mxu0 %v127
    %194 = vmatprep.subr.mxu0 %v131
    %195 = vmatpush1.msra.mxu0 %v130
    %196 = vmatprep.subr.mxu0 %v134
    %197 = vmatpush1.msra.mxu0 %v133
    %198 = vmatprep.subr.mxu0 %v137
    %199 = vmatpush1.msra.mxu0 %v136
    %200 = vmatprep.subr.mxu0 %v140
    %201 = vmatpush1.msra.mxu0 %v139
    %202 = vmatprep.subr.mxu0 %v143
    %203 = vmatpush1.msra.mxu0 %v142
    %204 = vmatprep.subr.mxu0 %v146
    %205 = vmatpush1.msra.mxu0 %v145
    %206 = vmatprep.subr.mxu0 %v149
    %207 = vmatpush1.msra.mxu0 %v148
    %208 = vmatprep.subr.mxu0 %v152
    %209 = vmatpush1.msra.mxu0 %v151
    %210 = vmatprep.subr.mxu0 %v155
    %211 = vmatpush1.msra.mxu0 %v154
    %212 = vmatprep.subr.mxu0 %v158
    %213 = vmatpush1.msra.mxu0 %v157
    %214 = vmatprep.subr.mxu0 %v161
    %215 = vmatpush1.msra.mxu0 %v160
    %216 = vmatprep.subr.mxu0 %v164
    %217 = vmatpush1.msra.mxu0 %v163
    %218 = vmatprep.subr.mxu0 %v167
    %219 = vmatpush1.msra.mxu0 %v166
    %220 = vmatprep.subr.mxu0 %v170
    %221 = vmatpush1.msra.mxu0 %v169
    %222 = vmatprep.subr.mxu0 %v173
    %223 = vmatpush1.msra.mxu0 %v172
    %224 = vmatprep.subr.mxu0 0.0
    %225 = vmatpush1.msra.mxu0 0.0
    %226 = vmatprep.subr.mxu0 0.0
    %227 = vmatpush1.msra.mxu0 0.0
    %228 = vmatprep.subr.mxu0 0.0
    %229 = vmatpush1.msra.mxu0 0.0
    %230 = vmatprep.subr.mxu0 0.0
    %231 = vmatpush1.msra.mxu0 0.0
    %232 = vmatprep.subr.mxu0 0.0
    %233 = vmatpush1.msra.mxu0 0.0
    %234 = vmatprep.subr.mxu0 0.0
    %235 = vmatpush1.msra.mxu0 0.0
    %236 = vmatprep.subr.mxu0 0.0
    %237 = vmatpush1.msra.mxu0 0.0
    %238 = vmatprep.subr.mxu0 0.0
    %239 = vmatpush1.msra.mxu0 0.0
    %240 = vmatprep.subr.mxu0 0.0
    %241 = vmatpush1.msra.mxu0 0.0
    %242 = vmatprep.subr.mxu0 0.0
    %243 = vmatpush1.msra.mxu0 0.0
    %244 = vmatprep.subr.mxu0 0.0
    %245 = vmatpush1.msra.mxu0 0.0
    %246 = vmatprep.subr.mxu0 0.0
    %247 = vmatpush1.msra.mxu0 0.0
    %248 = vmatprep.subr.mxu0 0.0
    %249 = vmatpush1.msra.mxu0 0.0
    %250 = vmatprep.subr.mxu0 0.0
    %251 = vmatpush1.msra.mxu0 0.0
    %252 = vmatprep.subr.mxu0 0.0
    %253 = vmatpush1.msra.mxu0 0.0
    %254 = vmatprep.subr.mxu0 0.0
    %255 = vmatpush1.msra.mxu0 0.0
    %256 = vmatprep.mubr.f32.mxu0 0.0
    %257 = vmatmul.mubr.f32.gmra.mrb[0].mxu0 %v119
    %v258 = vpop.f32.mrb[0].mxu0
    %v259 = vadd.f32 %v180, %v258
    %v260 = vpop.f32.mrb[0].mxu0
    %v261 = vadd.f32 %v184, %v260
    %262 = vmatprep.mubr.f32.mxu0 0.0
    %263 = vmatmul.mubr.f32.gmra.mrb[0].mxu0 %v120
    %v264 = vpop.f32.mrb[0].mxu0
    %v265 = vadd.f32 %v180, %v264
    %v266 = vpop.f32.mrb[0].mxu0
    %v267 = vadd.f32 %v184, %v266
    %268 = vmatprep.mubr.f32.mxu0 0.0
    %269 = vmatmul.mubr.f32.gmra.mrb[0].mxu0 %v121
    %v270 = vpop.f32.mrb[0].mxu0
    %v271 = vadd.f32 %v180, %v270
    %v272 = vpop.f32.mrb[0].mxu0
    %v273 = vadd.f32 %v184, %v272
    %274 = vmatprep.mubr.f32.mxu0 0.0
    %275 = vmatmul.mubr.f32.gmra.mrb[0].mxu0 %v122
    %v276 = vpop.f32.mrb[0].mxu0
    %v277 = vadd.f32 %v180, %v276
    %v278 = vpop.f32.mrb[0].mxu0
    %v279 = vadd.f32 %v184, %v278
    %280 = vmatprep.mubr.f32.mxu0 0.0
    %281 = vmatmul.mubr.f32.gmra.mrb[0].mxu0 %v123
    %v282 = vpop.f32.mrb[0].mxu0
    %v283 = vadd.f32 %v180, %v282
    %v284 = vpop.f32.mrb[0].mxu0
    %v285 = vadd.f32 %v184, %v284
    %286 = vmatprep.mubr.f32.mxu0 0.0
    %287 = vmatmul.mubr.f32.gmra.mrb[0].mxu0 %v124
    %v288 = vpop.f32.mrb[0].mxu0
    %v289 = vadd.f32 %v180, %v288
    %v290 = vpop.f32.mrb[0].mxu0
    %v291 = vadd.f32 %v184, %v290
    %292 = vmatprep.mubr.f32.mxu0 0.0
    %293 = vmatmul.mubr.f32.gmra.mrb[0].mxu0 %v125
    %v294 = vpop.f32.mrb[0].mxu0
    %v295 = vadd.f32 %v180, %v294
    %v296 = vpop.f32.mrb[0].mxu0
    %v297 = vadd.f32 %v184, %v296
    %298 = vmatprep.mubr.f32.mxu0 0.0
    %299 = vmatmul.mubr.f32.gmra.mrb[0].mxu0 %v126
    %v300 = vpop.f32.mrb[0].mxu0
    %v301 = vadd.f32 %v180, %v300
    %v302 = vpop.f32.mrb[0].mxu0
    %v303 = vadd.f32 %v184, %v302
    %304 = vdwg.mxu0
    %305 = vmatprep.subr.mxu0 0.0
    %306 = vmatpush1.msra.mxu0 %v129
    %307 = vmatprep.subr.mxu0 0.0
    %308 = vmatpush1.msra.mxu0 %v132
    %309 = vmatprep.subr.mxu0 0.0
    %310 = vmatpush1.msra.mxu0 %v135
    %311 = vmatprep.subr.mxu0 0.0
    %312 = vmatpush1.msra.mxu0 %v138
    %313 = vmatprep.subr.mxu0 0.0
    %314 = vmatpush1.msra.mxu0 %v141
    %315 = vmatprep.subr.mxu0 0.0
    %316 = vmatpush1.msra.mxu0 %v144
    %317 = vmatprep.subr.mxu0 0.0
    %318 = vmatpush1.msra.mxu0 %v147
    %319 = vmatprep.subr.mxu0 0.0
    %320 = vmatpush1.msra.mxu0 %v150
    %321 = vmatprep.subr.mxu0 0.0
    %322 = vmatpush1.msra.mxu0 %v153
    %323 = vmatprep.subr.mxu0 0.0
    %324 = vmatpush1.msra.mxu0 %v156
    %325 = vmatprep.subr.mxu0 0.0
    %326 = vmatpush1.msra.mxu0 %v159
    %327 = vmatprep.subr.mxu0 0.0
    %328 = vmatpush1.msra.mxu0 %v162
    %329 = vmatprep.subr.mxu0 0.0
    %330 = vmatpush1.msra.mxu0 %v165
    %331 = vmatprep.subr.mxu0 0.0
    %332 = vmatpush1.msra.mxu0 %v168
    %333 = vmatprep.subr.mxu0 0.0
    %334 = vmatpush1.msra.mxu0 %v171
    %335 = vmatprep.subr.mxu0 0.0
    %336 = vmatpush1.msra.mxu0 %v174
    %337 = vmatprep.subr.mxu0 0.0
    %338 = vmatpush1.msra.mxu0 0.0
    %339 = vmatprep.subr.mxu0 0.0
    %340 = vmatpush1.msra.mxu0 0.0
    %341 = vmatprep.subr.mxu0 0.0
    %342 = vmatpush1.msra.mxu0 0.0
    %343 = vmatprep.subr.mxu0 0.0
    %344 = vmatpush1.msra.mxu0 0.0
    %345 = vmatprep.subr.mxu0 0.0
    %346 = vmatpush1.msra.mxu0 0.0
    %347 = vmatprep.subr.mxu0 0.0
    %348 = vmatpush1.msra.mxu0 0.0
    %349 = vmatprep.subr.mxu0 0.0
    %350 = vmatpush1.msra.mxu0 0.0
    %351 = vmatprep.subr.mxu0 0.0
    %352 = vmatpush1.msra.mxu0 0.0
    %353 = vmatprep.subr.mxu0 0.0
    %354 = vmatpush1.msra.mxu0 0.0
    %355 = vmatprep.subr.mxu0 0.0
    %356 = vmatpush1.msra.mxu0 0.0
    %357 = vmatprep.subr.mxu0 0.0
    %358 = vmatpush1.msra.mxu0 0.0
    %359 = vmatprep.subr.mxu0 0.0
    %360 = vmatpush1.msra.mxu0 0.0
    %361 = vmatprep.subr.mxu0 0.0
    %362 = vmatpush1.msra.mxu0 0.0
    %363 = vmatprep.subr.mxu0 0.0
    %364 = vmatpush1.msra.mxu0 0.0
    %365 = vmatprep.subr.mxu0 0.0
    %366 = vmatpush1.msra.mxu0 0.0
    %367 = vmatprep.subr.mxu0 0.0
    %368 = vmatpush1.msra.mxu0 0.0
    %369 = vmatprep.mubr.f32.mxu0 0.0
    %370 = vmatmul.mubr.f32.gmra.mrb[0].mxu0 %v119
    %v371 = vpop.f32.mrb[0].mxu0
    %v372 = vadd.f32 %v188, %v371
    %v373 = vpop.f32.mrb[0].mxu0
    %374 = vmatprep.mubr.f32.mxu0 0.0
    %375 = vmatmul.mubr.f32.gmra.mrb[0].mxu0 %v120
    %v376 = vpop.f32.mrb[0].mxu0
    %v377 = vadd.f32 %v188, %v376
    %v378 = vpop.f32.mrb[0].mxu0
    %379 = vmatprep.mubr.f32.mxu0 0.0
    %380 = vmatmul.mubr.f32.gmra.mrb[0].mxu0 %v121
    %v381 = vpop.f32.mrb[0].mxu0
    %v382 = vadd.f32 %v188, %v381
    %v383 = vpop.f32.mrb[0].mxu0
    %384 = vmatprep.mubr.f32.mxu0 0.0
    %385 = vmatmul.mubr.f32.gmra.mrb[0].mxu0 %v122
    %v386 = vpop.f32.mrb[0].mxu0
    %v387 = vadd.f32 %v188, %v386
    %v388 = vpop.f32.mrb[0].mxu0
    %389 = vmatprep.mubr.f32.mxu0 0.0
    %390 = vmatmul.mubr.f32.gmra.mrb[0].mxu0 %v123
    %v391 = vpop.f32.mrb[0].mxu0
    %v392 = vadd.f32 %v188, %v391
    %v393 = vpop.f32.mrb[0].mxu0
    %394 = vmatprep.mubr.f32.mxu0 0.0
    %395 = vmatmul.mubr.f32.gmra.mrb[0].mxu0 %v124
    %v396 = vpop.f32.mrb[0].mxu0
    %v397 = vadd.f32 %v188, %v396
    %v398 = vpop.f32.mrb[0].mxu0
    %399 = vmatprep.mubr.f32.mxu0 0.0
    %400 = vmatmul.mubr.f32.gmra.mrb[0].mxu0 %v125
    %v401 = vpop.f32.mrb[0].mxu0
    %v402 = vadd.f32 %v188, %v401
    %v403 = vpop.f32.mrb[0].mxu0
    %404 = vmatprep.mubr.f32.mxu0 0.0
    %405 = vmatmul.mubr.f32.gmra.mrb[0].mxu0 %v126
    %v406 = vpop.f32.mrb[0].mxu0
    %v407 = vadd.f32 %v188, %v406
    %v408 = vpop.f32.mrb[0].mxu0
    %409 = vdwg.mxu0
    %410 = vst [vmem:[#allocation3] sm:$0xff] %v259
    %411 = vst [vmem:[#allocation3 + $0x8] sm:$0xff] %v261
    %412 = vst [vmem:[#allocation3 + $0x10] sm:$0xff] %v372
    %413 = vst [vmem:[#allocation3 + $0x18] sm:$0xff] %v265
    %414 = vst [vmem:[#allocation3 + $0x20] sm:$0xff] %v267
    %415 = vst [vmem:[#allocation3 + $0x28] sm:$0xff] %v377
    %416 = vst [vmem:[#allocation3 + $0x30] sm:$0xff] %v271
    %417 = vst [vmem:[#allocation3 + $0x38] sm:$0xff] %v273
    %418 = vst [vmem:[#allocation3 + $0x40] sm:$0xff] %v382
    %419 = vst [vmem:[#allocation3 + $0x48] sm:$0xff] %v277
    %420 = vst [vmem:[#allocation3 + $0x50] sm:$0xff] %v279
    %421 = vst [vmem:[#allocation3 + $0x58] sm:$0xff] %v387
    %422 = vst [vmem:[#allocation3 + $0x60] sm:$0xff] %v283
    %423 = vst [vmem:[#allocation3 + $0x68] sm:$0xff] %v285
    %424 = vst [vmem:[#allocation3 + $0x70] sm:$0xff] %v392
    %425 = vst [vmem:[#allocation3 + $0x78] sm:$0xff] %v289
    %426 = vst [vmem:[#allocation3 + $0x80] sm:$0xff] %v291
    %427 = vst [vmem:[#allocation3 + $0x88] sm:$0xff] %v397
    %428 = vst [vmem:[#allocation3 + $0x90] sm:$0xff] %v295
    %429 = vst [vmem:[#allocation3 + $0x98] sm:$0xff] %v297
    %430 = vst [vmem:[#allocation3 + $0xa0] sm:$0xff] %v402
    %431 = vst [vmem:[#allocation3 + $0xa8] sm:$0xff] %v301
    %432 = vst [vmem:[#allocation3 + $0xb0] sm:$0xff] %v303
    %433 = vst [vmem:[#allocation3 + $0xb8] sm:$0xff] %v407
    %v434 = vld [vmem:[#allocation11] sm:$0xff]
    %v435 = vld [vmem:[#allocation11 + $0x8] sm:$0xff]
    %v436 = vld [vmem:[#allocation11 + $0x10] sm:$0xff]
    %v437 = vld [vmem:[#allocation11 + $0x18] sm:$0xff]
    %v438 = vld [vmem:[#allocation11 + $0x20] sm:$0xff]
    %v439 = vld [vmem:[#allocation11 + $0x28] sm:$0xff]
    %v440 = vld [vmem:[#allocation11 + $0x30] sm:$0xff]
    %v441 = vld [vmem:[#allocation11 + $0x38] sm:$0xff]
    %v442 = vld [vmem:[#allocation11 + $0x40] sm:$0xff]
    %v443 = vld [vmem:[#allocation11 + $0x48] sm:$0xff]
    %v444 = vld [vmem:[#allocation11 + $0x50] sm:$0xff]
    %v445 = vld [vmem:[#allocation11 + $0x58] sm:$0xff]
    %v446 = vld [vmem:[#allocation11 + $0x60] sm:$0xff]
    %v447 = vld [vmem:[#allocation11 + $0x68] sm:$0xff]
    %v448 = vld [vmem:[#allocation11 + $0x70] sm:$0xff]
    %v449 = vld [vmem:[#allocation11 + $0x78] sm:$0xff]
    %v450 = vld [vmem:[#allocation11 + $0x80] sm:$0xff]
    %v451 = vld [vmem:[#allocation11 + $0x88] sm:$0xff]
    %v452 = vld [vmem:[#allocation11 + $0x90] sm:$0xff]
    %v453 = vld [vmem:[#allocation11 + $0x98] sm:$0xff]
    %v454 = vld [vmem:[#allocation11 + $0xa0] sm:$0xff]
    %v455 = vld [vmem:[#allocation11 + $0xa8] sm:$0xff]
    %v456 = vld [vmem:[#allocation11 + $0xb0] sm:$0xff]
    %v457 = vld [vmem:[#allocation11 + $0xb8] sm:$0xff]
    %v458 = vld [vmem:[#allocation11 + $0xc0] sm:$0xff]
    %v459 = vld [vmem:[#allocation11 + $0xc8] sm:$0xff]
    %v460 = vld [vmem:[#allocation11 + $0xd0] sm:$0xff]
    %v461 = vld [vmem:[#allocation11 + $0xd8] sm:$0xff]
    %v462 = vld [vmem:[#allocation11 + $0xe0] sm:$0xff]
    %v463 = vld [vmem:[#allocation11 + $0xe8] sm:$0xff]
    %v464 = vld [vmem:[#allocation11 + $0xf0] sm:$0xff]
    %v465 = vld [vmem:[#allocation11 + $0xf8] sm:$0xff]
    %v466 = vld [vmem:[#allocation13] sm:$0xff]
    %v467 = vld [vmem:[#allocation13 + $0x8] sm:$0xff]
    %v468 = vld [vmem:[#allocation13 + $0x10] sm:$0xff]
    %v469 = vld [vmem:[#allocation13 + $0x18] sm:$0xff]
    %v470 = vld [vmem:[#allocation13 + $0x20] sm:$0xff]
    %v471 = vld [vmem:[#allocation13 + $0x28] sm:$0xff]
    %v472 = vld [vmem:[#allocation13 + $0x30] sm:$0xff]
    %v473 = vld [vmem:[#allocation13 + $0x38] sm:$0xff]
    %v474 = vld [vmem:[#allocation13 + $0x40] sm:$0xff]
    %v475 = vld [vmem:[#allocation13 + $0x48] sm:$0xff]
    %v476 = vld [vmem:[#allocation13 + $0x50] sm:$0xff]
    %v477 = vld [vmem:[#allocation13 + $0x58] sm:$0xff]
    %v478 = vld [vmem:[#allocation13 + $0x60] sm:$0xff]
    %v479 = vld [vmem:[#allocation13 + $0x68] sm:$0xff]
    %v480 = vld [vmem:[#allocation13 + $0x70] sm:$0xff]
    %v481 = vld [vmem:[#allocation13 + $0x78] sm:$0xff]
    %v482 = vld [vmem:[#allocation2] sm:$0xff]
    %s483 = smul.u32 0, 3
    %s484 = smul.addr %s483, 8
    %s485 = scalar_lea.vmem [#allocation3], %s484
    %v486 = vld [vmem:[%s485] sm:$0xff]
    %v487 = vld [vmem:[%s485 + $0x8] sm:$0xff]
    %v488 = vld [vmem:[%s485 + $0x10] sm:$0xff]
    %489 = vmatprep.subr.mxu0 %v435
    %490 = vmatpush1.msra.mxu0 %v434
    %491 = vmatprep.subr.mxu0 %v437
    %492 = vmatpush1.msra.mxu0 %v436
    %493 = vmatprep.subr.mxu0 %v439
    %494 = vmatpush1.msra.mxu0 %v438
    %495 = vmatprep.subr.mxu0 %v441
    %496 = vmatpush1.msra.mxu0 %v440
    %497 = vmatprep.subr.mxu0 %v443
    %498 = vmatpush1.msra.mxu0 %v442
    %499 = vmatprep.subr.mxu0 %v445
    %500 = vmatpush1.msra.mxu0 %v444
    %501 = vmatprep.subr.mxu0 %v447
    %502 = vmatpush1.msra.mxu0 %v446
    %503 = vmatprep.subr.mxu0 %v449
    %504 = vmatpush1.msra.mxu0 %v448
    %505 = vmatprep.subr.mxu0 %v451
    %506 = vmatpush1.msra.mxu0 %v450
    %507 = vmatprep.subr.mxu0 %v453
    %508 = vmatpush1.msra.mxu0 %v452
    %509 = vmatprep.subr.mxu0 %v455
    %510 = vmatpush1.msra.mxu0 %v454
    %511 = vmatprep.subr.mxu0 %v457
    %512 = vmatpush1.msra.mxu0 %v456
    %513 = vmatprep.subr.mxu0 %v459
    %514 = vmatpush1.msra.mxu0 %v458
    %515 = vmatprep.subr.mxu0 %v461
    %516 = vmatpush1.msra.mxu0 %v460
    %517 = vmatprep.subr.mxu0 %v463
    %518 = vmatpush1.msra.mxu0 %v462
    %519 = vmatprep.subr.mxu0 %v465
    %520 = vmatpush1.msra.mxu0 %v464
    %521 = vmatprep.subr.mxu0 0.0
    %522 = vmatpush1.msra.mxu0 0.0
    %523 = vmatprep.subr.mxu0 0.0
    %524 = vmatpush1.msra.mxu0 0.0
    %525 = vmatprep.subr.mxu0 0.0
    %526 = vmatpush1.msra.mxu0 0.0
    %527 = vmatprep.subr.mxu0 0.0
    %528 = vmatpush1.msra.mxu0 0.0
    %529 = vmatprep.subr.mxu0 0.0
    %530 = vmatpush1.msra.mxu0 0.0
    %531 = vmatprep.subr.mxu0 0.0
    %532 = vmatpush1.msra.mxu0 0.0
    %533 = vmatprep.subr.mxu0 0.0
    %534 = vmatpush1.msra.mxu0 0.0
    %535 = vmatprep.subr.mxu0 0.0
    %536 = vmatpush1.msra.mxu0 0.0
    %537 = vmatprep.subr.mxu0 0.0
    %538 = vmatpush1.msra.mxu0 0.0
    %539 = vmatprep.subr.mxu0 0.0
    %540 = vmatpush1.msra.mxu0 0.0
    %541 = vmatprep.subr.mxu0 0.0
    %542 = vmatpush1.msra.mxu0 0.0
    %543 = vmatprep.subr.mxu0 0.0
    %544 = vmatpush1.msra.mxu0 0.0
    %545 = vmatprep.subr.mxu0 0.0
    %546 = vmatpush1.msra.mxu0 0.0
    %547 = vmatprep.subr.mxu0 0.0
    %548 = vmatpush1.msra.mxu0 0.0
    %549 = vmatprep.subr.mxu0 0.0
    %550 = vmatpush1.msra.mxu0 0.0
    %551 = vmatprep.subr.mxu0 0.0
    %552 = vmatpush1.msra.mxu0 0.0
    %553 = vmatprep.mubr.f32.mxu0 0.0
    %554 = vmatmul.mubr.f32.gmra.mrb[0].mxu0 %v482
    %v555 = vpop.f32.mrb[0].mxu0
    %v556 = vadd.f32 0.0, %v555
    %v557 = vpop.f32.mrb[0].mxu0
    %v558 = vadd.f32 0.0, %v557
    %559 = vdwg.mxu0
    %v560 = vadd.f32 %v486, %v556
    %v561 = vxor.u32 %v560, 2147483648
    %v562 = vmul.f32 %v561, 1.442695
    %v563 = vpow.pop %v562
    %v564 = vadd.f32 %v563, 1.0
    %v565 = vrcp.pop %v564
    %v566 = vmul.f32 1.0, %v565
    %v567 = vadd.f32 %v487, %v558
    %v568 = vxor.u32 %v567, 2147483648
    %v569 = vmul.f32 %v568, 1.442695
    %v570 = vpow.pop %v569
    %v571 = vadd.f32 %v570, 1.0
    %v572 = vrcp.pop %v571
    %v573 = vmul.f32 1.0, %v572
    %v574 = vmul.f32 %v573, %v482
    %575 = vmatprep.subr.mxu0 0.0
    %576 = vmatpush1.msra.mxu0 %v466
    %577 = vmatprep.subr.mxu0 0.0
    %578 = vmatpush1.msra.mxu0 %v467
    %579 = vmatprep.subr.mxu0 0.0
    %580 = vmatpush1.msra.mxu0 %v468
    %581 = vmatprep.subr.mxu0 0.0
    %582 = vmatpush1.msra.mxu0 %v469
    %583 = vmatprep.subr.mxu0 0.0
    %584 = vmatpush1.msra.mxu0 %v470
    %585 = vmatprep.subr.mxu0 0.0
    %586 = vmatpush1.msra.mxu0 %v471
    %587 = vmatprep.subr.mxu0 0.0
    %588 = vmatpush1.msra.mxu0 %v472
    %589 = vmatprep.subr.mxu0 0.0
    %590 = vmatpush1.msra.mxu0 %v473
    %591 = vmatprep.subr.mxu0 0.0
    %592 = vmatpush1.msra.mxu0 %v474
    %593 = vmatprep.subr.mxu0 0.0
    %594 = vmatpush1.msra.mxu0 %v475
    %595 = vmatprep.subr.mxu0 0.0
    %596 = vmatpush1.msra.mxu0 %v476
    %597 = vmatprep.subr.mxu0 0.0
    %598 = vmatpush1.msra.mxu0 %v477
    %599 = vmatprep.subr.mxu0 0.0
    %600 = vmatpush1.msra.mxu0 %v478
    %601 = vmatprep.subr.mxu0 0.0
    %602 = vmatpush1.msra.mxu0 %v479
    %603 = vmatprep.subr.mxu0 0.0
    %604 = vmatpush1.msra.mxu0 %v480
    %605 = vmatprep.subr.mxu0 0.0
    %606 = vmatpush1.msra.mxu0 %v481
    %607 = vmatprep.subr.mxu0 0.0
    %608 = vmatpush1.msra.mxu0 0.0
    %609 = vmatprep.subr.mxu0 0.0
    %610 = vmatpush1.msra.mxu0 0.0
    %611 = vmatprep.subr.mxu0 0.0
    %612 = vmatpush1.msra.mxu0 0.0
    %613 = vmatprep.subr.mxu0 0.0
    %614 = vmatpush1.msra.mxu0 0.0
    %615 = vmatprep.subr.mxu0 0.0
    %616 = vmatpush1.msra.mxu0 0.0
    %617 = vmatprep.subr.mxu0 0.0
    %618 = vmatpush1.msra.mxu0 0.0
    %619 = vmatprep.subr.mxu0 0.0
    %620 = vmatpush1.msra.mxu0 0.0
    %621 = vmatprep.subr.mxu0 0.0
    %622 = vmatpush1.msra.mxu0 0.0
    %623 = vmatprep.subr.mxu0 0.0
    %624 = vmatpush1.msra.mxu0 0.0
    %625 = vmatprep.subr.mxu0 0.0
    %626 = vmatpush1.msra.mxu0 0.0
    %627 = vmatprep.subr.mxu0 0.0
    %628 = vmatpush1.msra.mxu0 0.0
    %629 = vmatprep.subr.mxu0 0.0
    %630 = vmatpush1.msra.mxu0 0.0
    %631 = vmatprep.subr.mxu0 0.0
    %632 = vmatpush1.msra.mxu0 0.0
    %633 = vmatprep.subr.mxu0 0.0
    %634 = vmatpush1.msra.mxu0 0.0
    %635 = vmatprep.subr.mxu0 0.0
    %636 = vmatpush1.msra.mxu0 0.0
    %637 = vmatprep.subr.mxu0 0.0
    %638 = vmatpush1.msra.mxu0 0.0
    %639 = vmatprep.mubr.f32.mxu0 0.0
    %640 = vmatmul.mubr.f32.gmra.mrb[0].mxu0 %v574
    %v641 = vpop.f32.mrb[0].mxu0
    %v642 = vadd.f32 0.0, %v641
    %v643 = vpop.f32.mrb[0].mxu0
    %644 = vdwg.mxu0
    %v645 = vadd.f32 %v488, %v642
    %v646 = vtanh.pop %v645
    %v647 = vmul.f32 %v566, %v482
    %v648 = vsub.f32 1.0, %v566
    %v649 = vmul.f32 %v648, %v646
    %v650 = vadd.f32 %v647, %v649
    %651 = vst [vmem:[#allocation4] sm:$0xff] %v650
    %s652 = smul.u32 1, 3
    %s653 = smul.addr %s652, 8
    %s654 = scalar_lea.vmem [#allocation3], %s653
    %v655 = vld [vmem:[%s654] sm:$0xff]
    %v656 = vld [vmem:[%s654 + $0x8] sm:$0xff]
    %v657 = vld [vmem:[%s654 + $0x10] sm:$0xff]
    %658 = vmatprep.subr.mxu0 %v435
    %659 = vmatpush1.msra.mxu0 %v434
    %660 = vmatprep.subr.mxu0 %v437
    %661 = vmatpush1.msra.mxu0 %v436
    %662 = vmatprep.subr.mxu0 %v439
    %663 = vmatpush1.msra.mxu0 %v438
    %664 = vmatprep.subr.mxu0 %v441
    %665 = vmatpush1.msra.mxu0 %v440
    %666 = vmatprep.subr.mxu0 %v443
    %667 = vmatpush1.msra.mxu0 %v442
    %668 = vmatprep.subr.mxu0 %v445
    %669 = vmatpush1.msra.mxu0 %v444
    %670 = vmatprep.subr.mxu0 %v447
    %671 = vmatpush1.msra.mxu0 %v446
    %672 = vmatprep.subr.mxu0 %v449
    %673 = vmatpush1.msra.mxu0 %v448
    %674 = vmatprep.subr.mxu0 %v451
    %675 = vmatpush1.msra.mxu0 %v450
    %676 = vmatprep.subr.mxu0 %v453
    %677 = vmatpush1.msra.mxu0 %v452
    %678 = vmatprep.subr.mxu0 %v455
    %679 = vmatpush1.msra.mxu0 %v454
    %680 = vmatprep.subr.mxu0 %v457
    %681 = vmatpush1.msra.mxu0 %v456
    %682 = vmatprep.subr.mxu0 %v459
    %683 = vmatpush1.msra.mxu0 %v458
    %684 = vmatprep.subr.mxu0 %v461
    %685 = vmatpush1.msra.mxu0 %v460
    %686 = vmatprep.subr.mxu0 %v463
    %687 = vmatpush1.msra.mxu0 %v462
    %688 = vmatprep.subr.mxu0 %v465
    %689 = vmatpush1.msra.mxu0 %v464
    %690 = vmatprep.subr.mxu0 0.0
    %691 = vmatpush1.msra.mxu0 0.0
    %692 = vmatprep.subr.mxu0 0.0
    %693 = vmatpush1.msra.mxu0 0.0
    %694 = vmatprep.subr.mxu0 0.0
    %695 = vmatpush1.msra.mxu0 0.0
    %696 = vmatprep.subr.mxu0 0.0
    %697 = vmatpush1.msra.mxu0 0.0
    %698 = vmatprep.subr.mxu0 0.0
    %699 = vmatpush1.msra.mxu0 0.0
    %700 = vmatprep.subr.mxu0 0.0
    %701 = vmatpush1.msra.mxu0 0.0
    %702 = vmatprep.subr.mxu0 0.0
    %703 = vmatpush1.msra.mxu0 0.0
    %704 = vmatprep.subr.mxu0 0.0
    %705 = vmatpush1.msra.mxu0 0.0
    %706 = vmatprep.subr.mxu0 0.0
    %707 = vmatpush1.msra.mxu0 0.0
    %708 = vmatprep.subr.mxu0 0.0
    %709 = vmatpush1.msra.mxu0 0.0
    %710 = vmatprep.subr.mxu0 0.0
    %711 = vmatpush1.msra.mxu0 0.0
    %712 = vmatprep.subr.mxu0 0.0
    %713 = vmatpush1.msra.mxu0 0.0
    %714 = vmatprep.subr.mxu0 0.0
    %715 = vmatpush1.msra.mxu0 0.0
    %716 = vmatprep.subr.mxu0 0.0
    %717 = vmatpush1.msra.mxu0 0.0
    %718 = vmatprep.subr.mxu0 0.0
    %719 = vmatpush1.msra.mxu0 0.0
    %720 = vmatprep.subr.mxu0 0.0
    %721 = vmatpush1.msra.mxu0 0.0
    %722 = vmatprep.mubr.f32.mxu0 0.0
    %723 = vmatmul.mubr.f32.gmra.mrb[0].mxu0 %v650
    %v724 = vpop.f32.mrb[0].mxu0
    %v725 = vadd.f32 0.0, %v724
    %v726 = vpop.f32.mrb[0].mxu0
    %v727 = vadd.f32 0.0, %v726
    %728 = vdwg.mxu0
    %v729 = vadd.f32 %v655, %v725
    %v730 = vxor.u32 %v729, 2147483648
    %v731 = vmul.f32 %v730, 1.442695
    %v732 = vpow.pop %v731
    %v733 = vadd.f32 %v732, 1.0
    %v734 = vrcp.pop %v733
    %v735 = vmul.f32 1.0, %v734
    %v736 = vadd.f32 %v656, %v727
    %v737 = vxor.u32 %v736, 2147483648
    %v738 = vmul.f32 %v737, 1.442695
    %v739 = vpow.pop %v738
    %v740 = vadd.f32 %v739, 1.0
    %v741 = vrcp.pop %v740
    %v742 = vmul.f32 1.0, %v741
    %v743 = vmul.f32 %v742, %v650
    %744 = vmatprep.subr.mxu0 0.0
    %745 = vmatpush1.msra.mxu0 %v466
    %746 = vmatprep.subr.mxu0 0.0
    %747 = vmatpush1.msra.mxu0 %v467
    %748 = vmatprep.subr.mxu0 0.0
    %749 = vmatpush1.msra.mxu0 %v468
    %750 = vmatprep.subr.mxu0 0.0
    %751 = vmatpush1.msra.mxu0 %v469
    %752 = vmatprep.subr.mxu0 0.0
    %753 = vmatpush1.msra.mxu0 %v470
    %754 = vmatprep.subr.mxu0 0.0
    %755 = vmatpush1.msra.mxu0 %v471
    %756 = vmatprep.subr.mxu0 0.0
    %757 = vmatpush1.msra.mxu0 %v472
    %758 = vmatprep.subr.mxu0 0.0
    %759 = vmatpush1.msra.mxu0 %v473
    %760 = vmatprep.subr.mxu0 0.0
    %761 = vmatpush1.msra.mxu0 %v474
    %762 = vmatprep.subr.mxu0 0.0
    %763 = vmatpush1.msra.mxu0 %v475
    %764 = vmatprep.subr.mxu0 0.0
    %765 = vmatpush1.msra.mxu0 %v476
    %766 = vmatprep.subr.mxu0 0.0
    %767 = vmatpush1.msra.mxu0 %v477
    %768 = vmatprep.subr.mxu0 0.0
    %769 = vmatpush1.msra.mxu0 %v478
    %770 = vmatprep.subr.mxu0 0.0
    %771 = vmatpush1.msra.mxu0 %v479
    %772 = vmatprep.subr.mxu0 0.0
    %773 = vmatpush1.msra.mxu0 %v480
    %774 = vmatprep.subr.mxu0 0.0
    %775 = vmatpush1.msra.mxu0 %v481
    %776 = vmatprep.subr.mxu0 0.0
    %777 = vmatpush1.msra.mxu0 0.0
    %778 = vmatprep.subr.mxu0 0.0
    %779 = vmatpush1.msra.mxu0 0.0
    %780 = vmatprep.subr.mxu0 0.0
    %781 = vmatpush1.msra.mxu0 0.0
    %782 = vmatprep.subr.mxu0 0.0
    %783 = vmatpush1.msra.mxu0 0.0
    %784 = vmatprep.subr.mxu0 0.0
    %785 = vmatpush1.msra.mxu0 0.0
    %786 = vmatprep.subr.mxu0 0.0
    %787 = vmatpush1.msra.mxu0 0.0
    %788 = vmatprep.subr.mxu0 0.0
    %789 = vmatpush1.msra.mxu0 0.0
    %790 = vmatprep.subr.mxu0 0.0
    %791 = vmatpush1.msra.mxu0 0.0
    %792 = vmatprep.subr.mxu0 0.0
    %793 = vmatpush1.msra.mxu0 0.0
    %794 = vmatprep.subr.mxu0 0.0
    %795 = vmatpush1.msra.mxu0 0.0
    %796 = vmatprep.subr.mxu0 0.0
    %797 = vmatpush1.msra.mxu0 0.0
    %798 = vmatprep.subr.mxu0 0.0
    %799 = vmatpush1.msra.mxu0 0.0
    %800 = vmatprep.subr.mxu0 0.0
    %801 = vmatpush1.msra.mxu0 0.0
    %802 = vmatprep.subr.mxu0 0.0
    %803 = vmatpush1.msra.mxu0 0.0
    %804 = vmatprep.subr.mxu0 0.0
    %805 = vmatpush1.msra.mxu0 0.0
    %806 = vmatprep.subr.mxu0 0.0
    %807 = vmatpush1.msra.mxu0 0.0
    %808 = vmatprep.mubr.f32.mxu0 0.0
    %809 = vmatmul.mubr.f32.gmra.mrb[0].mxu0 %v743
    %v810 = vpop.f32.mrb[0].mxu0
    %v811 = vadd.f32 0.0, %v810
    %v812 = vpop.f32.mrb[0].mxu0
    %813 = vdwg.mxu0
    %v814 = vadd.f32 %v657, %v811
    %v815 = vtanh.pop %v814
    %v816 = vmul.f32 %v735, %v650
    %v817 = vsub.f32 1.0, %v735
    %v818 = vmul.f32 %v817, %v815
    %v819 = vadd.f32 %v816, %v818
    %s820 = scalar_lea.vmem [#allocation4], 8
    %821 = vst [vmem:[%s820] sm:$0xff] %v819
    %s822 = smul.u32 2, 3
    %s823 = smul.addr %s822, 8
    %s824 = scalar_lea.vmem [#allocation3], %s823
    %v825 = vld [vmem:[%s824] sm:$0xff]
    %v826 = vld [vmem:[%s824 + $0x8] sm:$0xff]
    %v827 = vld [vmem:[%s824 + $0x10] sm:$0xff]
    %828 = vmatprep.subr.mxu0 %v435
    %829 = vmatpush1.msra.mxu0 %v434
    %830 = vmatprep.subr.mxu0 %v437
    %831 = vmatpush1.msra.mxu0 %v436
    %832 = vmatprep.subr.mxu0 %v439
    %833 = vmatpush1.msra.mxu0 %v438
    %834 = vmatprep.subr.mxu0 %v441
    %835 = vmatpush1.msra.mxu0 %v440
    %836 = vmatprep.subr.mxu0 %v443
    %837 = vmatpush1.msra.mxu0 %v442
    %838 = vmatprep.subr.mxu0 %v445
    %839 = vmatpush1.msra.mxu0 %v444
    %840 = vmatprep.subr.mxu0 %v447
    %841 = vmatpush1.msra.mxu0 %v446
    %842 = vmatprep.subr.mxu0 %v449
    %843 = vmatpush1.msra.mxu0 %v448
    %844 = vmatprep.subr.mxu0 %v451
    %845 = vmatpush1.msra.mxu0 %v450
    %846 = vmatprep.subr.mxu0 %v453
    %847 = vmatpush1.msra.mxu0 %v452
    %848 = vmatprep.subr.mxu0 %v455
    %849 = vmatpush1.msra.mxu0 %v454
    %850 = vmatprep.subr.mxu0 %v457
    %851 = vmatpush1.msra.mxu0 %v456
    %852 = vmatprep.subr.mxu0 %v459
    %853 = vmatpush1.msra.mxu0 %v458
    %854 = vmatprep.subr.mxu0 %v461
    %855 = vmatpush1.msra.mxu0 %v460
    %856 = vmatprep.subr.mxu0 %v463
    %857 = vmatpush1.msra.mxu0 %v462
    %858 = vmatprep.subr.mxu0 %v465
    %859 = vmatpush1.msra.mxu0 %v464
    %860 = vmatprep.subr.mxu0 0.0
    %861 = vmatpush1.msra.mxu0 0.0
    %862 = vmatprep.subr.mxu0 0.0
    %863 = vmatpush1.msra.mxu0 0.0
    %864 = vmatprep.subr.mxu0 0.0
    %865 = vmatpush1.msra.mxu0 0.0
    %866 = vmatprep.subr.mxu0 0.0
    %867 = vmatpush1.msra.mxu0 0.0
    %868 = vmatprep.subr.mxu0 0.0
    %869 = vmatpush1.msra.mxu0 0.0
    %870 = vmatprep.subr.mxu0 0.0
    %871 = vmatpush1.msra.mxu0 0.0
    %872 = vmatprep.subr.mxu0 0.0
    %873 = vmatpush1.msra.mxu0 0.0
    %874 = vmatprep.subr.mxu0 0.0
    %875 = vmatpush1.msra.mxu0 0.0
    %876 = vmatprep.subr.mxu0 0.0
    %877 = vmatpush1.msra.mxu0 0.0
    %878 = vmatprep.subr.mxu0 0.0
    %879 = vmatpush1.msra.mxu0 0.0
    %880 = vmatprep.subr.mxu0 0.0
    %881 = vmatpush1.msra.mxu0 0.0
    %882 = vmatprep.subr.mxu0 0.0
    %883 = vmatpush1.msra.mxu0 0.0
    %884 = vmatprep.subr.mxu0 0.0
    %885 = vmatpush1.msra.mxu0 0.0
    %886 = vmatprep.subr.mxu0 0.0
    %887 = vmatpush1.msra.mxu0 0.0
    %888 = vmatprep.subr.mxu0 0.0
    %889 = vmatpush1.msra.mxu0 0.0
    %890 = vmatprep.subr.mxu0 0.0
    %891 = vmatpush1.msra.mxu0 0.0
    %892 = vmatprep.mubr.f32.mxu0 0.0
    %893 = vmatmul.mubr.f32.gmra.mrb[0].mxu0 %v819
    %v894 = vpop.f32.mrb[0].mxu0
    %v895 = vadd.f32 0.0, %v894
    %v896 = vpop.f32.mrb[0].mxu0
    %v897 = vadd.f32 0.0, %v896
    %898 = vdwg.mxu0
    %v899 = vadd.f32 %v825, %v895
    %v900 = vxor.u32 %v899, 2147483648
    %v901 = vmul.f32 %v900, 1.442695
    %v902 = vpow.pop %v901
    %v903 = vadd.f32 %v902, 1.0
    %v904 = vrcp.pop %v903
    %v905 = vmul.f32 1.0, %v904
    %v906 = vadd.f32 %v826, %v897
    %v907 = vxor.u32 %v906, 2147483648
    %v908 = vmul.f32 %v907, 1.442695
    %v909 = vpow.pop %v908
    %v910 = vadd.f32 %v909, 1.0
    %v911 = vrcp.pop %v910
    %v912 = vmul.f32 1.0, %v911
    %v913 = vmul.f32 %v912, %v819
    %914 = vmatprep.subr.mxu0 0.0
    %915 = vmatpush1.msra.mxu0 %v466
    %916 = vmatprep.subr.mxu0 0.0
    %917 = vmatpush1.msra.mxu0 %v467
    %918 = vmatprep.subr.mxu0 0.0
    %919 = vmatpush1.msra.mxu0 %v468
    %920 = vmatprep.subr.mxu0 0.0
    %921 = vmatpush1.msra.mxu0 %v469
    %922 = vmatprep.subr.mxu0 0.0
    %923 = vmatpush1.msra.mxu0 %v470
    %924 = vmatprep.subr.mxu0 0.0
    %925 = vmatpush1.msra.mxu0 %v471
    %926 = vmatprep.subr.mxu0 0.0
    %927 = vmatpush1.msra.mxu0 %v472
    %928 = vmatprep.subr.mxu0 0.0
    %929 = vmatpush1.msra.mxu0 %v473
    %930 = vmatprep.subr.mxu0 0.0
    %931 = vmatpush1.msra.mxu0 %v474
    %932 = vmatprep.subr.mxu0 0.0
    %933 = vmatpush1.msra.mxu0 %v475
    %934 = vmatprep.subr.mxu0 0.0
    %935 = vmatpush1.msra.mxu0 %v476
    %936 = vmatprep.subr.mxu0 0.0
    %937 = vmatpush1.msra.mxu0 %v477
    %938 = vmatprep.subr.mxu0 0.0
    %939 = vmatpush1.msra.mxu0 %v478
    %940 = vmatprep.subr.mxu0 0.0
    %941 = vmatpush1.msra.mxu0 %v479
    %942 = vmatprep.subr.mxu0 0.0
    %943 = vmatpush1.msra.mxu0 %v480
    %944 = vmatprep.subr.mxu0 0.0
    %945 = vmatpush1.msra.mxu0 %v481
    %946 = vmatprep.subr.mxu0 0.0
    %947 = vmatpush1.msra.mxu0 0.0
    %948 = vmatprep.subr.mxu0 0.0
    %949 = vmatpush1.msra.mxu0 0.0
    %950 = vmatprep.subr.mxu0 0.0
    %951 = vmatpush1.msra.mxu0 0.0
    %952 = vmatprep.subr.mxu0 0.0
    %953 = vmatpush1.msra.mxu0 0.0
    %954 = vmatprep.subr.mxu0 0.0
    %955 = vmatpush1.msra.mxu0 0.0
    %956 = vmatprep.subr.mxu0 0.0
    %957 = vmatpush1.msra.mxu0 0.0
    %958 = vmatprep.subr.mxu0 0.0
    %959 = vmatpush1.msra.mxu0 0.0
    %960 = vmatprep.subr.mxu0 0.0
    %961 = vmatpush1.msra.mxu0 0.0
    %962 = vmatprep.subr.mxu0 0.0
    %963 = vmatpush1.msra.mxu0 0.0
    %964 = vmatprep.subr.mxu0 0.0
    %965 = vmatpush1.msra.mxu0 0.0
    %966 = vmatprep.subr.mxu0 0.0
    %967 = vmatpush1.msra.mxu0 0.0
    %968 = vmatprep.subr.mxu0 0.0
    %969 = vmatpush1.msra.mxu0 0.0
    %970 = vmatprep.subr.mxu0 0.0
    %971 = vmatpush1.msra.mxu0 0.0
    %972 = vmatprep.subr.mxu0 0.0
    %973 = vmatpush1.msra.mxu0 0.0
    %974 = vmatprep.subr.mxu0 0.0
    %975 = vmatpush1.msra.mxu0 0.0
    %976 = vmatprep.subr.mxu0 0.0
    %977 = vmatpush1.msra.mxu0 0.0
    %978 = vmatprep.mubr.f32.mxu0 0.0
    %979 = vmatmul.mubr.f32.gmra.mrb[0].mxu0 %v913
    %v980 = vpop.f32.mrb[0].mxu0
    %v981 = vadd.f32 0.0, %v980
    %v982 = vpop.f32.mrb[0].mxu0
    %983 = vdwg.mxu0
    %v984 = vadd.f32 %v827, %v981
    %v985 = vtanh.pop %v984
    %v986 = vmul.f32 %v905, %v819
    %v987 = vsub.f32 1.0, %v905
    %v988 = vmul.f32 %v987, %v985
    %v989 = vadd.f32 %v986, %v988
    %s990 = scalar_lea.vmem [#allocation4], 16
    %991 = vst [vmem:[%s990] sm:$0xff] %v989
    %s992 = smul.u32 3, 3
    %s993 = smul.addr %s992, 8
    %s994 = scalar_lea.vmem [#allocation3], %s993
    %v995 = vld [vmem:[%s994] sm:$0xff]
    %v996 = vld [vmem:[%s994 + $0x8] sm:$0xff]
    %v997 = vld [vmem:[%s994 + $0x10] sm:$0xff]
    %998 = vmatprep.subr.mxu0 %v435
    %999 = vmatpush1.msra.mxu0 %v434
    %1000 = vmatprep.subr.mxu0 %v437
    %1001 = vmatpush1.msra.mxu0 %v436
    %1002 = vmatprep.subr.mxu0 %v439
    %1003 = vmatpush1.msra.mxu0 %v438
    %1004 = vmatprep.subr.mxu0 %v441
    %1005 = vmatpush1.msra.mxu0 %v440
    %1006 = vmatprep.subr.mxu0 %v443
    %1007 = vmatpush1.msra.mxu0 %v442
    %1008 = vmatprep.subr.mxu0 %v445
    %1009 = vmatpush1.msra.mxu0 %v444
    %1010 = vmatprep.subr.mxu0 %v447
    %1011 = vmatpush1.msra.mxu0 %v446
    %1012 = vmatprep.subr.mxu0 %v449
    %1013 = vmatpush1.msra.mxu0 %v448
    %1014 = vmatprep.subr.mxu0 %v451
    %1015 = vmatpush1.msra.mxu0 %v450
    %1016 = vmatprep.subr.mxu0 %v453
    %1017 = vmatpush1.msra.mxu0 %v452
    %1018 = vmatprep.subr.mxu0 %v455
    %1019 = vmatpush1.msra.mxu0 %v454
    %1020 = vmatprep.subr.mxu0 %v457
    %1021 = vmatpush1.msra.mxu0 %v456
    %1022 = vmatprep.subr.mxu0 %v459
    %1023 = vmatpush1.msra.mxu0 %v458
    %1024 = vmatprep.subr.mxu0 %v461
    %1025 = vmatpush1.msra.mxu0 %v460
    %1026 = vmatprep.subr.mxu0 %v463
    %1027 = vmatpush1.msra.mxu0 %v462
    %1028 = vmatprep.subr.mxu0 %v465
    %1029 = vmatpush1.msra.mxu0 %v464
    %1030 = vmatprep.subr.mxu0 0.0
    %1031 = vmatpush1.msra.mxu0 0.0
    %1032 = vmatprep.subr.mxu0 0.0
    %1033 = vmatpush1.msra.mxu0 0.0
    %1034 = vmatprep.subr.mxu0 0.0
    %1035 = vmatpush1.msra.mxu0 0.0
    %1036 = vmatprep.subr.mxu0 0.0
    %1037 = vmatpush1.msra.mxu0 0.0
    %1038 = vmatprep.subr.mxu0 0.0
    %1039 = vmatpush1.msra.mxu0 0.0
    %1040 = vmatprep.subr.mxu0 0.0
    %1041 = vmatpush1.msra.mxu0 0.0
    %1042 = vmatprep.subr.mxu0 0.0
    %1043 = vmatpush1.msra.mxu0 0.0
    %1044 = vmatprep.subr.mxu0 0.0
    %1045 = vmatpush1.msra.mxu0 0.0
    %1046 = vmatprep.subr.mxu0 0.0
    %1047 = vmatpush1.msra.mxu0 0.0
    %1048 = vmatprep.subr.mxu0 0.0
    %1049 = vmatpush1.msra.mxu0 0.0
    %1050 = vmatprep.subr.mxu0 0.0
    %1051 = vmatpush1.msra.mxu0 0.0
    %1052 = vmatprep.subr.mxu0 0.0
    %1053 = vmatpush1.msra.mxu0 0.0
    %1054 = vmatprep.subr.mxu0 0.0
    %1055 = vmatpush1.msra.mxu0 0.0
    %1056 = vmatprep.subr.mxu0 0.0
    %1057 = vmatpush1.msra.mxu0 0.0
    %1058 = vmatprep.subr.mxu0 0.0
    %1059 = vmatpush1.msra.mxu0 0.0
    %1060 = vmatprep.subr.mxu0 0.0
    %1061 = vmatpush1.msra.mxu0 0.0
    %1062 = vmatprep.mubr.f32.mxu0 0.0
    %1063 = vmatmul.mubr.f32.gmra.mrb[0].mxu0 %v989
    %v1064 = vpop.f32.mrb[0].mxu0
    %v1065 = vadd.f32 0.0, %v1064
    %v1066 = vpop.f32.mrb[0].mxu0
    %v1067 = vadd.f32 0.0, %v1066
    %1068 = vdwg.mxu0
    %v1069 = vadd.f32 %v995, %v1065
    %v1070 = vxor.u32 %v1069, 2147483648
    %v1071 = vmul.f32 %v1070, 1.442695
    %v1072 = vpow.pop %v1071
    %v1073 = vadd.f32 %v1072, 1.0
    %v1074 = vrcp.pop %v1073
    %v1075 = vmul.f32 1.0, %v1074
    %v1076 = vadd.f32 %v996, %v1067
    %v1077 = vxor.u32 %v1076, 2147483648
    %v1078 = vmul.f32 %v1077, 1.442695
    %v1079 = vpow.pop %v1078
    %v1080 = vadd.f32 %v1079, 1.0
    %v1081 = vrcp.pop %v1080
    %v1082 = vmul.f32 1.0, %v1081
    %v1083 = vmul.f32 %v1082, %v989
    %1084 = vmatprep.subr.mxu0 0.0
    %1085 = vmatpush1.msra.mxu0 %v466
    %1086 = vmatprep.subr.mxu0 0.0
    %1087 = vmatpush1.msra.mxu0 %v467
    %1088 = vmatprep.subr.mxu0 0.0
    %1089 = vmatpush1.msra.mxu0 %v468
    %1090 = vmatprep.subr.mxu0 0.0
    %1091 = vmatpush1.msra.mxu0 %v469
    %1092 = vmatprep.subr.mxu0 0.0
    %1093 = vmatpush1.msra.mxu0 %v470
    %1094 = vmatprep.subr.mxu0 0.0
    %1095 = vmatpush1.msra.mxu0 %v471
    %1096 = vmatprep.subr.mxu0 0.0
    %1097 = vmatpush1.msra.mxu0 %v472
    %1098 = vmatprep.subr.mxu0 0.0
    %1099 = vmatpush1.msra.mxu0 %v473
    %1100 = vmatprep.subr.mxu0 0.0
    %1101 = vmatpush1.msra.mxu0 %v474
    %1102 = vmatprep.subr.mxu0 0.0
    %1103 = vmatpush1.msra.mxu0 %v475
    %1104 = vmatprep.subr.mxu0 0.0
    %1105 = vmatpush1.msra.mxu0 %v476
    %1106 = vmatprep.subr.mxu0 0.0
    %1107 = vmatpush1.msra.mxu0 %v477
    %1108 = vmatprep.subr.mxu0 0.0
    %1109 = vmatpush1.msra.mxu0 %v478
    %1110 = vmatprep.subr.mxu0 0.0
    %1111 = vmatpush1.msra.mxu0 %v479
    %1112 = vmatprep.subr.mxu0 0.0
    %1113 = vmatpush1.msra.mxu0 %v480
    %1114 = vmatprep.subr.mxu0 0.0
    %1115 = vmatpush1.msra.mxu0 %v481
    %1116 = vmatprep.subr.mxu0 0.0
    %1117 = vmatpush1.msra.mxu0 0.0
    %1118 = vmatprep.subr.mxu0 0.0
    %1119 = vmatpush1.msra.mxu0 0.0
    %1120 = vmatprep.subr.mxu0 0.0
    %1121 = vmatpush1.msra.mxu0 0.0
    %1122 = vmatprep.subr.mxu0 0.0
    %1123 = vmatpush1.msra.mxu0 0.0
    %1124 = vmatprep.subr.mxu0 0.0
    %1125 = vmatpush1.msra.mxu0 0.0
    %1126 = vmatprep.subr.mxu0 0.0
    %1127 = vmatpush1.msra.mxu0 0.0
    %1128 = vmatprep.subr.mxu0 0.0
    %1129 = vmatpush1.msra.mxu0 0.0
    %1130 = vmatprep.subr.mxu0 0.0
    %1131 = vmatpush1.msra.mxu0 0.0
    %1132 = vmatprep.subr.mxu0 0.0
    %1133 = vmatpush1.msra.mxu0 0.0
    %1134 = vmatprep.subr.mxu0 0.0
    %1135 = vmatpush1.msra.mxu0 0.0
    %1136 = vmatprep.subr.mxu0 0.0
    %1137 = vmatpush1.msra.mxu0 0.0
    %1138 = vmatprep.subr.mxu0 0.0
    %1139 = vmatpush1.msra.mxu0 0.0
    %1140 = vmatprep.subr.mxu0 0.0
    %1141 = vmatpush1.msra.mxu0 0.0
    %1142 = vmatprep.subr.mxu0 0.0
    %1143 = vmatpush1.msra.mxu0 0.0
    %1144 = vmatprep.subr.mxu0 0.0
    %1145 = vmatpush1.msra.mxu0 0.0
    %1146 = vmatprep.subr.mxu0 0.0
    %1147 = vmatpush1.msra.mxu0 0.0
    %1148 = vmatprep.mubr.f32.mxu0 0.0
    %1149 = vmatmul.mubr.f32.gmra.mrb[0].mxu0 %v1083
    %v1150 = vpop.f32.mrb[0].mxu0
    %v1151 = vadd.f32 0.0, %v1150
    %v1152 = vpop.f32.mrb[0].mxu0
    %1153 = vdwg.mxu0
    %v1154 = vadd.f32 %v997, %v1151
    %v1155 = vtanh.pop %v1154
    %v1156 = vmul.f32 %v1075, %v989
    %v1157 = vsub.f32 1.0, %v1075
    %v1158 = vmul.f32 %v1157, %v1155
    %v1159 = vadd.f32 %v1156, %v1158
    %s1160 = scalar_lea.vmem [#allocation4], 24
    %1161 = vst [vmem:[%s1160] sm:$0xff] %v1159
    %s1162 = smul.u32 4, 3
    %s1163 = smul.addr %s1162, 8
    %s1164 = scalar_lea.vmem [#allocation3], %s1163
    %v1165 = vld [vmem:[%s1164] sm:$0xff]
    %v1166 = vld [vmem:[%s1164 + $0x8] sm:$0xff]
    %v1167 = vld [vmem:[%s1164 + $0x10] sm:$0xff]
    %1168 = vmatprep.subr.mxu0 %v435
    %1169 = vmatpush1.msra.mxu0 %v434
    %1170 = vmatprep.subr.mxu0 %v437
    %1171 = vmatpush1.msra.mxu0 %v436
    %1172 = vmatprep.subr.mxu0 %v439
    %1173 = vmatpush1.msra.mxu0 %v438
    %1174 = vmatprep.subr.mxu0 %v441
    %1175 = vmatpush1.msra.mxu0 %v440
    %1176 = vmatprep.subr.mxu0 %v443
    %1177 = vmatpush1.msra.mxu0 %v442
    %1178 = vmatprep.subr.mxu0 %v445
    %1179 = vmatpush1.msra.mxu0 %v444
    %1180 = vmatprep.subr.mxu0 %v447
    %1181 = vmatpush1.msra.mxu0 %v446
    %1182 = vmatprep.subr.mxu0 %v449
    %1183 = vmatpush1.msra.mxu0 %v448
    %1184 = vmatprep.subr.mxu0 %v451
    %1185 = vmatpush1.msra.mxu0 %v450
    %1186 = vmatprep.subr.mxu0 %v453
    %1187 = vmatpush1.msra.mxu0 %v452
    %1188 = vmatprep.subr.mxu0 %v455
    %1189 = vmatpush1.msra.mxu0 %v454
    %1190 = vmatprep.subr.mxu0 %v457
    %1191 = vmatpush1.msra.mxu0 %v456
    %1192 = vmatprep.subr.mxu0 %v459
    %1193 = vmatpush1.msra.mxu0 %v458
    %1194 = vmatprep.subr.mxu0 %v461
    %1195 = vmatpush1.msra.mxu0 %v460
    %1196 = vmatprep.subr.mxu0 %v463
    %1197 = vmatpush1.msra.mxu0 %v462
    %1198 = vmatprep.subr.mxu0 %v465
    %1199 = vmatpush1.msra.mxu0 %v464
    %1200 = vmatprep.subr.mxu0 0.0
    %1201 = vmatpush1.msra.mxu0 0.0
    %1202 = vmatprep.subr.mxu0 0.0
    %1203 = vmatpush1.msra.mxu0 0.0
    %1204 = vmatprep.subr.mxu0 0.0
    %1205 = vmatpush1.msra.mxu0 0.0
    %1206 = vmatprep.subr.mxu0 0.0
    %1207 = vmatpush1.msra.mxu0 0.0
    %1208 = vmatprep.subr.mxu0 0.0
    %1209 = vmatpush1.msra.mxu0 0.0
    %1210 = vmatprep.subr.mxu0 0.0
    %1211 = vmatpush1.msra.mxu0 0.0
    %1212 = vmatprep.subr.mxu0 0.0
    %1213 = vmatpush1.msra.mxu0 0.0
    %1214 = vmatprep.subr.mxu0 0.0
    %1215 = vmatpush1.msra.mxu0 0.0
    %1216 = vmatprep.subr.mxu0 0.0
    %1217 = vmatpush1.msra.mxu0 0.0
    %1218 = vmatprep.subr.mxu0 0.0
    %1219 = vmatpush1.msra.mxu0 0.0
    %1220 = vmatprep.subr.mxu0 0.0
    %1221 = vmatpush1.msra.mxu0 0.0
    %1222 = vmatprep.subr.mxu0 0.0
    %1223 = vmatpush1.msra.mxu0 0.0
    %1224 = vmatprep.subr.mxu0 0.0
    %1225 = vmatpush1.msra.mxu0 0.0
    %1226 = vmatprep.subr.mxu0 0.0
    %1227 = vmatpush1.msra.mxu0 0.0
    %1228 = vmatprep.subr.mxu0 0.0
    %1229 = vmatpush1.msra.mxu0 0.0
    %1230 = vmatprep.subr.mxu0 0.0
    %1231 = vmatpush1.msra.mxu0 0.0
    %1232 = vmatprep.mubr.f32.mxu0 0.0
    %1233 = vmatmul.mubr.f32.gmra.mrb[0].mxu0 %v1159
    %v1234 = vpop.f32.mrb[0].mxu0
    %v1235 = vadd.f32 0.0, %v1234
    %v1236 = vpop.f32.mrb[0].mxu0
    %v1237 = vadd.f32 0.0, %v1236
    %1238 = vdwg.mxu0
    %v1239 = vadd.f32 %v1165, %v1235
    %v1240 = vxor.u32 %v1239, 2147483648
    %v1241 = vmul.f32 %v1240, 1.442695
    %v1242 = vpow.pop %v1241
    %v1243 = vadd.f32 %v1242, 1.0
    %v1244 = vrcp.pop %v1243
    %v1245 = vmul.f32 1.0, %v1244
    %v1246 = vadd.f32 %v1166, %v1237
    %v1247 = vxor.u32 %v1246, 2147483648
    %v1248 = vmul.f32 %v1247, 1.442695
    %v1249 = vpow.pop %v1248
    %v1250 = vadd.f32 %v1249, 1.0
    %v1251 = vrcp.pop %v1250
    %v1252 = vmul.f32 1.0, %v1251
    %v1253 = vmul.f32 %v1252, %v1159
    %1254 = vmatprep.subr.mxu0 0.0
    %1255 = vmatpush1.msra.mxu0 %v466
    %1256 = vmatprep.subr.mxu0 0.0
    %1257 = vmatpush1.msra.mxu0 %v467
    %1258 = vmatprep.subr.mxu0 0.0
    %1259 = vmatpush1.msra.mxu0 %v468
    %1260 = vmatprep.subr.mxu0 0.0
    %1261 = vmatpush1.msra.mxu0 %v469
    %1262 = vmatprep.subr.mxu0 0.0
    %1263 = vmatpush1.msra.mxu0 %v470
    %1264 = vmatprep.subr.mxu0 0.0
    %1265 = vmatpush1.msra.mxu0 %v471
    %1266 = vmatprep.subr.mxu0 0.0
    %1267 = vmatpush1.msra.mxu0 %v472
    %1268 = vmatprep.subr.mxu0 0.0
    %1269 = vmatpush1.msra.mxu0 %v473
    %1270 = vmatprep.subr.mxu0 0.0
    %1271 = vmatpush1.msra.mxu0 %v474
    %1272 = vmatprep.subr.mxu0 0.0
    %1273 = vmatpush1.msra.mxu0 %v475
    %1274 = vmatprep.subr.mxu0 0.0
    %1275 = vmatpush1.msra.mxu0 %v476
    %1276 = vmatprep.subr.mxu0 0.0
    %1277 = vmatpush1.msra.mxu0 %v477
    %1278 = vmatprep.subr.mxu0 0.0
    %1279 = vmatpush1.msra.mxu0 %v478
    %1280 = vmatprep.subr.mxu0 0.0
    %1281 = vmatpush1.msra.mxu0 %v479
    %1282 = vmatprep.subr.mxu0 0.0
    %1283 = vmatpush1.msra.mxu0 %v480
    %1284 = vmatprep.subr.mxu0 0.0
    %1285 = vmatpush1.msra.mxu0 %v481
    %1286 = vmatprep.subr.mxu0 0.0
    %1287 = vmatpush1.msra.mxu0 0.0
    %1288 = vmatprep.subr.mxu0 0.0
    %1289 = vmatpush1.msra.mxu0 0.0
    %1290 = vmatprep.subr.mxu0 0.0
    %1291 = vmatpush1.msra.mxu0 0.0
    %1292 = vmatprep.subr.mxu0 0.0
    %1293 = vmatpush1.msra.mxu0 0.0
    %1294 = vmatprep.subr.mxu0 0.0
    %1295 = vmatpush1.msra.mxu0 0.0
    %1296 = vmatprep.subr.mxu0 0.0
    %1297 = vmatpush1.msra.mxu0 0.0
    %1298 = vmatprep.subr.mxu0 0.0
    %1299 = vmatpush1.msra.mxu0 0.0
    %1300 = vmatprep.subr.mxu0 0.0
    %1301 = vmatpush1.msra.mxu0 0.0
    %1302 = vmatprep.subr.mxu0 0.0
    %1303 = vmatpush1.msra.mxu0 0.0
    %1304 = vmatprep.subr.mxu0 0.0
    %1305 = vmatpush1.msra.mxu0 0.0
    %1306 = vmatprep.subr.mxu0 0.0
    %1307 = vmatpush1.msra.mxu0 0.0
    %1308 = vmatprep.subr.mxu0 0.0
    %1309 = vmatpush1.msra.mxu0 0.0
    %1310 = vmatprep.subr.mxu0 0.0
    %1311 = vmatpush1.msra.mxu0 0.0
    %1312 = vmatprep.subr.mxu0 0.0
    %1313 = vmatpush1.msra.mxu0 0.0
    %1314 = vmatprep.subr.mxu0 0.0
    %1315 = vmatpush1.msra.mxu0 0.0
    %1316 = vmatprep.subr.mxu0 0.0
    %1317 = vmatpush1.msra.mxu0 0.0
    %1318 = vmatprep.mubr.f32.mxu0 0.0
    %1319 = vmatmul.mubr.f32.gmra.mrb[0].mxu0 %v1253
    %v1320 = vpop.f32.mrb[0].mxu0
    %v1321 = vadd.f32 0.0, %v1320
    %v1322 = vpop.f32.mrb[0].mxu0
    %1323 = vdwg.mxu0
    %v1324 = vadd.f32 %v1167, %v1321
    %v1325 = vtanh.pop %v1324
    %v1326 = vmul.f32 %v1245, %v1159
    %v1327 = vsub.f32 1.0, %v1245
    %v1328 = vmul.f32 %v1327, %v1325
    %v1329 = vadd.f32 %v1326, %v1328
    %s1330 = scalar_lea.vmem [#allocation4], 32
    %1331 = vst [vmem:[%s1330] sm:$0xff] %v1329
    %s1332 = smul.u32 5, 3
    %s1333 = smul.addr %s1332, 8
    %s1334 = scalar_lea.vmem [#allocation3], %s1333
    %v1335 = vld [vmem:[%s1334] sm:$0xff]
    %v1336 = vld [vmem:[%s1334 + $0x8] sm:$0xff]
    %v1337 = vld [vmem:[%s1334 + $0x10] sm:$0xff]
    %1338 = vmatprep.subr.mxu0 %v435
    %1339 = vmatpush1.msra.mxu0 %v434
    %1340 = vmatprep.subr.mxu0 %v437
    %1341 = vmatpush1.msra.mxu0 %v436
    %1342 = vmatprep.subr.mxu0 %v439
    %1343 = vmatpush1.msra.mxu0 %v438
    %1344 = vmatprep.subr.mxu0 %v441
    %1345 = vmatpush1.msra.mxu0 %v440
    %1346 = vmatprep.subr.mxu0 %v443
    %1347 = vmatpush1.msra.mxu0 %v442
    %1348 = vmatprep.subr.mxu0 %v445
    %1349 = vmatpush1.msra.mxu0 %v444
    %1350 = vmatprep.subr.mxu0 %v447
    %1351 = vmatpush1.msra.mxu0 %v446
    %1352 = vmatprep.subr.mxu0 %v449
    %1353 = vmatpush1.msra.mxu0 %v448
    %1354 = vmatprep.subr.mxu0 %v451
    %1355 = vmatpush1.msra.mxu0 %v450
    %1356 = vmatprep.subr.mxu0 %v453
    %1357 = vmatpush1.msra.mxu0 %v452
    %1358 = vmatprep.subr.mxu0 %v455
    %1359 = vmatpush1.msra.mxu0 %v454
    %1360 = vmatprep.subr.mxu0 %v457
    %1361 = vmatpush1.msra.mxu0 %v456
    %1362 = vmatprep.subr.mxu0 %v459
    %1363 = vmatpush1.msra.mxu0 %v458
    %1364 = vmatprep.subr.mxu0 %v461
    %1365 = vmatpush1.msra.mxu0 %v460
    %1366 = vmatprep.subr.mxu0 %v463
    %1367 = vmatpush1.msra.mxu0 %v462
    %1368 = vmatprep.subr.mxu0 %v465
    %1369 = vmatpush1.msra.mxu0 %v464
    %1370 = vmatprep.subr.mxu0 0.0
    %1371 = vmatpush1.msra.mxu0 0.0
    %1372 = vmatprep.subr.mxu0 0.0
    %1373 = vmatpush1.msra.mxu0 0.0
    %1374 = vmatprep.subr.mxu0 0.0
    %1375 = vmatpush1.msra.mxu0 0.0
    %1376 = vmatprep.subr.mxu0 0.0
    %1377 = vmatpush1.msra.mxu0 0.0
    %1378 = vmatprep.subr.mxu0 0.0
    %1379 = vmatpush1.msra.mxu0 0.0
    %1380 = vmatprep.subr.mxu0 0.0
    %1381 = vmatpush1.msra.mxu0 0.0
    %1382 = vmatprep.subr.mxu0 0.0
    %1383 = vmatpush1.msra.mxu0 0.0
    %1384 = vmatprep.subr.mxu0 0.0
    %1385 = vmatpush1.msra.mxu0 0.0
    %1386 = vmatprep.subr.mxu0 0.0
    %1387 = vmatpush1.msra.mxu0 0.0
    %1388 = vmatprep.subr.mxu0 0.0
    %1389 = vmatpush1.msra.mxu0 0.0
    %1390 = vmatprep.subr.mxu0 0.0
    %1391 = vmatpush1.msra.mxu0 0.0
    %1392 = vmatprep.subr.mxu0 0.0
    %1393 = vmatpush1.msra.mxu0 0.0
    %1394 = vmatprep.subr.mxu0 0.0
    %1395 = vmatpush1.msra.mxu0 0.0
    %1396 = vmatprep.subr.mxu0 0.0
    %1397 = vmatpush1.msra.mxu0 0.0
    %1398 = vmatprep.subr.mxu0 0.0
    %1399 = vmatpush1.msra.mxu0 0.0
    %1400 = vmatprep.subr.mxu0 0.0
    %1401 = vmatpush1.msra.mxu0 0.0
    %1402 = vmatprep.mubr.f32.mxu0 0.0
    %1403 = vmatmul.mubr.f32.gmra.mrb[0].mxu0 %v1329
    %v1404 = vpop.f32.mrb[0].mxu0
    %v1405 = vadd.f32 0.0, %v1404
    %v1406 = vpop.f32.mrb[0].mxu0
    %v1407 = vadd.f32 0.0, %v1406
    %1408 = vdwg.mxu0
    %v1409 = vadd.f32 %v1335, %v1405
    %v1410 = vxor.u32 %v1409, 2147483648
    %v1411 = vmul.f32 %v1410, 1.442695
    %v1412 = vpow.pop %v1411
    %v1413 = vadd.f32 %v1412, 1.0
    %v1414 = vrcp.pop %v1413
    %v1415 = vmul.f32 1.0, %v1414
    %v1416 = vadd.f32 %v1336, %v1407
    %v1417 = vxor.u32 %v1416, 2147483648
    %v1418 = vmul.f32 %v1417, 1.442695
    %v1419 = vpow.pop %v1418
    %v1420 = vadd.f32 %v1419, 1.0
    %v1421 = vrcp.pop %v1420
    %v1422 = vmul.f32 1.0, %v1421
    %v1423 = vmul.f32 %v1422, %v1329
    %1424 = vmatprep.subr.mxu0 0.0
    %1425 = vmatpush1.msra.mxu0 %v466
    %1426 = vmatprep.subr.mxu0 0.0
    %1427 = vmatpush1.msra.mxu0 %v467
    %1428 = vmatprep.subr.mxu0 0.0
    %1429 = vmatpush1.msra.mxu0 %v468
    %1430 = vmatprep.subr.mxu0 0.0
    %1431 = vmatpush1.msra.mxu0 %v469
    %1432 = vmatprep.subr.mxu0 0.0
    %1433 = vmatpush1.msra.mxu0 %v470
    %1434 = vmatprep.subr.mxu0 0.0
    %1435 = vmatpush1.msra.mxu0 %v471
    %1436 = vmatprep.subr.mxu0 0.0
    %1437 = vmatpush1.msra.mxu0 %v472
    %1438 = vmatprep.subr.mxu0 0.0
    %1439 = vmatpush1.msra.mxu0 %v473
    %1440 = vmatprep.subr.mxu0 0.0
    %1441 = vmatpush1.msra.mxu0 %v474
    %1442 = vmatprep.subr.mxu0 0.0
    %1443 = vmatpush1.msra.mxu0 %v475
    %1444 = vmatprep.subr.mxu0 0.0
    %1445 = vmatpush1.msra.mxu0 %v476
    %1446 = vmatprep.subr.mxu0 0.0
    %1447 = vmatpush1.msra.mxu0 %v477
    %1448 = vmatprep.subr.mxu0 0.0
    %1449 = vmatpush1.msra.mxu0 %v478
    %1450 = vmatprep.subr.mxu0 0.0
    %1451 = vmatpush1.msra.mxu0 %v479
    %1452 = vmatprep.subr.mxu0 0.0
    %1453 = vmatpush1.msra.mxu0 %v480
    %1454 = vmatprep.subr.mxu0 0.0
    %1455 = vmatpush1.msra.mxu0 %v481
    %1456 = vmatprep.subr.mxu0 0.0
    %1457 = vmatpush1.msra.mxu0 0.0
    %1458 = vmatprep.subr.mxu0 0.0
    %1459 = vmatpush1.msra.mxu0 0.0
    %1460 = vmatprep.subr.mxu0 0.0
    %1461 = vmatpush1.msra.mxu0 0.0
    %1462 = vmatprep.subr.mxu0 0.0
    %1463 = vmatpush1.msra.mxu0 0.0
    %1464 = vmatprep.subr.mxu0 0.0
    %1465 = vmatpush1.msra.mxu0 0.0
    %1466 = vmatprep.subr.mxu0 0.0
    %1467 = vmatpush1.msra.mxu0 0.0
    %1468 = vmatprep.subr.mxu0 0.0
    %1469 = vmatpush1.msra.mxu0 0.0
    %1470 = vmatprep.subr.mxu0 0.0
    %1471 = vmatpush1.msra.mxu0 0.0
    %1472 = vmatprep.subr.mxu0 0.0
    %1473 = vmatpush1.msra.mxu0 0.0
    %1474 = vmatprep.subr.mxu0 0.0
    %1475 = vmatpush1.msra.mxu0 0.0
    %1476 = vmatprep.subr.mxu0 0.0
    %1477 = vmatpush1.msra.mxu0 0.0
    %1478 = vmatprep.subr.mxu0 0.0
    %1479 = vmatpush1.msra.mxu0 0.0
    %1480 = vmatprep.subr.mxu0 0.0
    %1481 = vmatpush1.msra.mxu0 0.0
    %1482 = vmatprep.subr.mxu0 0.0
    %1483 = vmatpush1.msra.mxu0 0.0
    %1484 = vmatprep.subr.mxu0 0.0
    %1485 = vmatpush1.msra.mxu0 0.0
    %1486 = vmatprep.subr.mxu0 0.0
    %1487 = vmatpush1.msra.mxu0 0.0
    %1488 = vmatprep.mubr.f32.mxu0 0.0
    %1489 = vmatmul.mubr.f32.gmra.mrb[0].mxu0 %v1423
    %v1490 = vpop.f32.mrb[0].mxu0
    %v1491 = vadd.f32 0.0, %v1490
    %v1492 = vpop.f32.mrb[0].mxu0
    %1493 = vdwg.mxu0
    %v1494 = vadd.f32 %v1337, %v1491
    %v1495 = vtanh.pop %v1494
    %v1496 = vmul.f32 %v1415, %v1329
    %v1497 = vsub.f32 1.0, %v1415
    %v1498 = vmul.f32 %v1497, %v1495
    %v1499 = vadd.f32 %v1496, %v1498
    %s1500 = scalar_lea.vmem [#allocation4], 40
    %1501 = vst [vmem:[%s1500] sm:$0xff] %v1499
    %s1502 = smul.u32 6, 3
    %s1503 = smul.addr %s1502, 8
    %s1504 = scalar_lea.vmem [#allocation3], %s1503
    %v1505 = vld [vmem:[%s1504] sm:$0xff]
    %v1506 = vld [vmem:[%s1504 + $0x8] sm:$0xff]
    %v1507 = vld [vmem:[%s1504 + $0x10] sm:$0xff]
    %1508 = vmatprep.subr.mxu0 %v435
    %1509 = vmatpush1.msra.mxu0 %v434
    %1510 = vmatprep.subr.mxu0 %v437
    %1511 = vmatpush1.msra.mxu0 %v436
    %1512 = vmatprep.subr.mxu0 %v439
    %1513 = vmatpush1.msra.mxu0 %v438
    %1514 = vmatprep.subr.mxu0 %v441
    %1515 = vmatpush1.msra.mxu0 %v440
    %1516 = vmatprep.subr.mxu0 %v443
    %1517 = vmatpush1.msra.mxu0 %v442
    %1518 = vmatprep.subr.mxu0 %v445
    %1519 = vmatpush1.msra.mxu0 %v444
    %1520 = vmatprep.subr.mxu0 %v447
    %1521 = vmatpush1.msra.mxu0 %v446
    %1522 = vmatprep.subr.mxu0 %v449
    %1523 = vmatpush1.msra.mxu0 %v448
    %1524 = vmatprep.subr.mxu0 %v451
    %1525 = vmatpush1.msra.mxu0 %v450
    %1526 = vmatprep.subr.mxu0 %v453
    %1527 = vmatpush1.msra.mxu0 %v452
    %1528 = vmatprep.subr.mxu0 %v455
    %1529 = vmatpush1.msra.mxu0 %v454
    %1530 = vmatprep.subr.mxu0 %v457
    %1531 = vmatpush1.msra.mxu0 %v456
    %1532 = vmatprep.subr.mxu0 %v459
    %1533 = vmatpush1.msra.mxu0 %v458
    %1534 = vmatprep.subr.mxu0 %v461
    %1535 = vmatpush1.msra.mxu0 %v460
    %1536 = vmatprep.subr.mxu0 %v463
    %1537 = vmatpush1.msra.mxu0 %v462
    %1538 = vmatprep.subr.mxu0 %v465
    %1539 = vmatpush1.msra.mxu0 %v464
    %1540 = vmatprep.subr.mxu0 0.0
    %1541 = vmatpush1.msra.mxu0 0.0
    %1542 = vmatprep.subr.mxu0 0.0
    %1543 = vmatpush1.msra.mxu0 0.0
    %1544 = vmatprep.subr.mxu0 0.0
    %1545 = vmatpush1.msra.mxu0 0.0
    %1546 = vmatprep.subr.mxu0 0.0
    %1547 = vmatpush1.msra.mxu0 0.0
    %1548 = vmatprep.subr.mxu0 0.0
    %1549 = vmatpush1.msra.mxu0 0.0
    %1550 = vmatprep.subr.mxu0 0.0
    %1551 = vmatpush1.msra.mxu0 0.0
    %1552 = vmatprep.subr.mxu0 0.0
    %1553 = vmatpush1.msra.mxu0 0.0
    %1554 = vmatprep.subr.mxu0 0.0
    %1555 = vmatpush1.msra.mxu0 0.0
    %1556 = vmatprep.subr.mxu0 0.0
    %1557 = vmatpush1.msra.mxu0 0.0
    %1558 = vmatprep.subr.mxu0 0.0
    %1559 = vmatpush1.msra.mxu0 0.0
    %1560 = vmatprep.subr.mxu0 0.0
    %1561 = vmatpush1.msra.mxu0 0.0
    %1562 = vmatprep.subr.mxu0 0.0
    %1563 = vmatpush1.msra.mxu0 0.0
    %1564 = vmatprep.subr.mxu0 0.0
    %1565 = vmatpush1.msra.mxu0 0.0
    %1566 = vmatprep.subr.mxu0 0.0
    %1567 = vmatpush1.msra.mxu0 0.0
    %1568 = vmatprep.subr.mxu0 0.0
    %1569 = vmatpush1.msra.mxu0 0.0
    %1570 = vmatprep.subr.mxu0 0.0
    %1571 = vmatpush1.msra.mxu0 0.0
    %1572 = vmatprep.mubr.f32.mxu0 0.0
    %1573 = vmatmul.mubr.f32.gmra.mrb[0].mxu0 %v1499
    %v1574 = vpop.f32.mrb[0].mxu0
    %v1575 = vadd.f32 0.0, %v1574
    %v1576 = vpop.f32.mrb[0].mxu0
    %v1577 = vadd.f32 0.0, %v1576
    %1578 = vdwg.mxu0
    %v1579 = vadd.f32 %v1505, %v1575
    %v1580 = vxor.u32 %v1579, 2147483648
    %v1581 = vmul.f32 %v1580, 1.442695
    %v1582 = vpow.pop %v1581
    %v1583 = vadd.f32 %v1582, 1.0
    %v1584 = vrcp.pop %v1583
    %v1585 = vmul.f32 1.0, %v1584
    %v1586 = vadd.f32 %v1506, %v1577
    %v1587 = vxor.u32 %v1586, 2147483648
    %v1588 = vmul.f32 %v1587, 1.442695
    %v1589 = vpow.pop %v1588
    %v1590 = vadd.f32 %v1589, 1.0
    %v1591 = vrcp.pop %v1590
    %v1592 = vmul.f32 1.0, %v1591
    %v1593 = vmul.f32 %v1592, %v1499
    %1594 = vmatprep.subr.mxu0 0.0
    %1595 = vmatpush1.msra.mxu0 %v466
    %1596 = vmatprep.subr.mxu0 0.0
    %1597 = vmatpush1.msra.mxu0 %v467
    %1598 = vmatprep.subr.mxu0 0.0
    %1599 = vmatpush1.msra.mxu0 %v468
    %1600 = vmatprep.subr.mxu0 0.0
    %1601 = vmatpush1.msra.mxu0 %v469
    %1602 = vmatprep.subr.mxu0 0.0
    %1603 = vmatpush1.msra.mxu0 %v470
    %1604 = vmatprep.subr.mxu0 0.0
    %1605 = vmatpush1.msra.mxu0 %v471
    %1606 = vmatprep.subr.mxu0 0.0
    %1607 = vmatpush1.msra.mxu0 %v472
    %1608 = vmatprep.subr.mxu0 0.0
    %1609 = vmatpush1.msra.mxu0 %v473
    %1610 = vmatprep.subr.mxu0 0.0
    %1611 = vmatpush1.msra.mxu0 %v474
    %1612 = vmatprep.subr.mxu0 0.0
    %1613 = vmatpush1.msra.mxu0 %v475
    %1614 = vmatprep.subr.mxu0 0.0
    %1615 = vmatpush1.msra.mxu0 %v476
    %1616 = vmatprep.subr.mxu0 0.0
    %1617 = vmatpush1.msra.mxu0 %v477
    %1618 = vmatprep.subr.mxu0 0.0
    %1619 = vmatpush1.msra.mxu0 %v478
    %1620 = vmatprep.subr.mxu0 0.0
    %1621 = vmatpush1.msra.mxu0 %v479
    %1622 = vmatprep.subr.mxu0 0.0
    %1623 = vmatpush1.msra.mxu0 %v480
    %1624 = vmatprep.subr.mxu0 0.0
    %1625 = vmatpush1.msra.mxu0 %v481
    %1626 = vmatprep.subr.mxu0 0.0
    %1627 = vmatpush1.msra.mxu0 0.0
    %1628 = vmatprep.subr.mxu0 0.0
    %1629 = vmatpush1.msra.mxu0 0.0
    %1630 = vmatprep.subr.mxu0 0.0
    %1631 = vmatpush1.msra.mxu0 0.0
    %1632 = vmatprep.subr.mxu0 0.0
    %1633 = vmatpush1.msra.mxu0 0.0
    %1634 = vmatprep.subr.mxu0 0.0
    %1635 = vmatpush1.msra.mxu0 0.0
    %1636 = vmatprep.subr.mxu0 0.0
    %1637 = vmatpush1.msra.mxu0 0.0
    %1638 = vmatprep.subr.mxu0 0.0
    %1639 = vmatpush1.msra.mxu0 0.0
    %1640 = vmatprep.subr.mxu0 0.0
    %1641 = vmatpush1.msra.mxu0 0.0
    %1642 = vmatprep.subr.mxu0 0.0
    %1643 = vmatpush1.msra.mxu0 0.0
    %1644 = vmatprep.subr.mxu0 0.0
    %1645 = vmatpush1.msra.mxu0 0.0
    %1646 = vmatprep.subr.mxu0 0.0
    %1647 = vmatpush1.msra.mxu0 0.0
    %1648 = vmatprep.subr.mxu0 0.0
    %1649 = vmatpush1.msra.mxu0 0.0
    %1650 = vmatprep.subr.mxu0 0.0
    %1651 = vmatpush1.msra.mxu0 0.0
    %1652 = vmatprep.subr.mxu0 0.0
    %1653 = vmatpush1.msra.mxu0 0.0
    %1654 = vmatprep.subr.mxu0 0.0
    %1655 = vmatpush1.msra.mxu0 0.0
    %1656 = vmatprep.subr.mxu0 0.0
    %1657 = vmatpush1.msra.mxu0 0.0
    %1658 = vmatprep.mubr.f32.mxu0 0.0
    %1659 = vmatmul.mubr.f32.gmra.mrb[0].mxu0 %v1593
    %v1660 = vpop.f32.mrb[0].mxu0
    %v1661 = vadd.f32 0.0, %v1660
    %v1662 = vpop.f32.mrb[0].mxu0
    %1663 = vdwg.mxu0
    %v1664 = vadd.f32 %v1507, %v1661
    %v1665 = vtanh.pop %v1664
    %v1666 = vmul.f32 %v1585, %v1499
    %v1667 = vsub.f32 1.0, %v1585
    %v1668 = vmul.f32 %v1667, %v1665
    %v1669 = vadd.f32 %v1666, %v1668
    %s1670 = scalar_lea.vmem [#allocation4], 48
    %1671 = vst [vmem:[%s1670] sm:$0xff] %v1669
    %s1672 = smul.u32 7, 3
    %s1673 = smul.addr %s1672, 8
    %s1674 = scalar_lea.vmem [#allocation3], %s1673
    %v1675 = vld [vmem:[%s1674] sm:$0xff]
    %v1676 = vld [vmem:[%s1674 + $0x8] sm:$0xff]
    %v1677 = vld [vmem:[%s1674 + $0x10] sm:$0xff]
    %1678 = vmatprep.subr.mxu0 %v435
    %1679 = vmatpush1.msra.mxu0 %v434
    %1680 = vmatprep.subr.mxu0 %v437
    %1681 = vmatpush1.msra.mxu0 %v436
    %1682 = vmatprep.subr.mxu0 %v439
    %1683 = vmatpush1.msra.mxu0 %v438
    %1684 = vmatprep.subr.mxu0 %v441
    %1685 = vmatpush1.msra.mxu0 %v440
    %1686 = vmatprep.subr.mxu0 %v443
    %1687 = vmatpush1.msra.mxu0 %v442
    %1688 = vmatprep.subr.mxu0 %v445
    %1689 = vmatpush1.msra.mxu0 %v444
    %1690 = vmatprep.subr.mxu0 %v447
    %1691 = vmatpush1.msra.mxu0 %v446
    %1692 = vmatprep.subr.mxu0 %v449
    %1693 = vmatpush1.msra.mxu0 %v448
    %1694 = vmatprep.subr.mxu0 %v451
    %1695 = vmatpush1.msra.mxu0 %v450
    %1696 = vmatprep.subr.mxu0 %v453
    %1697 = vmatpush1.msra.mxu0 %v452
    %1698 = vmatprep.subr.mxu0 %v455
    %1699 = vmatpush1.msra.mxu0 %v454
    %1700 = vmatprep.subr.mxu0 %v457
    %1701 = vmatpush1.msra.mxu0 %v456
    %1702 = vmatprep.subr.mxu0 %v459
    %1703 = vmatpush1.msra.mxu0 %v458
    %1704 = vmatprep.subr.mxu0 %v461
    %1705 = vmatpush1.msra.mxu0 %v460
    %1706 = vmatprep.subr.mxu0 %v463
    %1707 = vmatpush1.msra.mxu0 %v462
    %1708 = vmatprep.subr.mxu0 %v465
    %1709 = vmatpush1.msra.mxu0 %v464
    %1710 = vmatprep.subr.mxu0 0.0
    %1711 = vmatpush1.msra.mxu0 0.0
    %1712 = vmatprep.subr.mxu0 0.0
    %1713 = vmatpush1.msra.mxu0 0.0
    %1714 = vmatprep.subr.mxu0 0.0
    %1715 = vmatpush1.msra.mxu0 0.0
    %1716 = vmatprep.subr.mxu0 0.0
    %1717 = vmatpush1.msra.mxu0 0.0
    %1718 = vmatprep.subr.mxu0 0.0
    %1719 = vmatpush1.msra.mxu0 0.0
    %1720 = vmatprep.subr.mxu0 0.0
    %1721 = vmatpush1.msra.mxu0 0.0
    %1722 = vmatprep.subr.mxu0 0.0
    %1723 = vmatpush1.msra.mxu0 0.0
    %1724 = vmatprep.subr.mxu0 0.0
    %1725 = vmatpush1.msra.mxu0 0.0
    %1726 = vmatprep.subr.mxu0 0.0
    %1727 = vmatpush1.msra.mxu0 0.0
    %1728 = vmatprep.subr.mxu0 0.0
    %1729 = vmatpush1.msra.mxu0 0.0
    %1730 = vmatprep.subr.mxu0 0.0
    %1731 = vmatpush1.msra.mxu0 0.0
    %1732 = vmatprep.subr.mxu0 0.0
    %1733 = vmatpush1.msra.mxu0 0.0
    %1734 = vmatprep.subr.mxu0 0.0
    %1735 = vmatpush1.msra.mxu0 0.0
    %1736 = vmatprep.subr.mxu0 0.0
    %1737 = vmatpush1.msra.mxu0 0.0
    %1738 = vmatprep.subr.mxu0 0.0
    %1739 = vmatpush1.msra.mxu0 0.0
    %1740 = vmatprep.subr.mxu0 0.0
    %1741 = vmatpush1.msra.mxu0 0.0
    %1742 = vmatprep.mubr.f32.mxu0 0.0
    %1743 = vmatmul.mubr.f32.gmra.mrb[0].mxu0 %v1669
    %v1744 = vpop.f32.mrb[0].mxu0
    %v1745 = vadd.f32 0.0, %v1744
    %v1746 = vpop.f32.mrb[0].mxu0
    %v1747 = vadd.f32 0.0, %v1746
    %1748 = vdwg.mxu0
    %v1749 = vadd.f32 %v1675, %v1745
    %v1750 = vxor.u32 %v1749, 2147483648
    %v1751 = vmul.f32 %v1750, 1.442695
    %v1752 = vpow.pop %v1751
    %v1753 = vadd.f32 %v1752, 1.0
    %v1754 = vrcp.pop %v1753
    %v1755 = vmul.f32 1.0, %v1754
    %v1756 = vadd.f32 %v1676, %v1747
    %v1757 = vxor.u32 %v1756, 2147483648
    %v1758 = vmul.f32 %v1757, 1.442695
    %v1759 = vpow.pop %v1758
    %v1760 = vadd.f32 %v1759, 1.0
    %v1761 = vrcp.pop %v1760
    %v1762 = vmul.f32 1.0, %v1761
    %v1763 = vmul.f32 %v1762, %v1669
    %1764 = vmatprep.subr.mxu0 0.0
    %1765 = vmatpush1.msra.mxu0 %v466
    %1766 = vmatprep.subr.mxu0 0.0
    %1767 = vmatpush1.msra.mxu0 %v467
    %1768 = vmatprep.subr.mxu0 0.0
    %1769 = vmatpush1.msra.mxu0 %v468
    %1770 = vmatprep.subr.mxu0 0.0
    %1771 = vmatpush1.msra.mxu0 %v469
    %1772 = vmatprep.subr.mxu0 0.0
    %1773 = vmatpush1.msra.mxu0 %v470
    %1774 = vmatprep.subr.mxu0 0.0
    %1775 = vmatpush1.msra.mxu0 %v471
    %1776 = vmatprep.subr.mxu0 0.0
    %1777 = vmatpush1.msra.mxu0 %v472
    %1778 = vmatprep.subr.mxu0 0.0
    %1779 = vmatpush1.msra.mxu0 %v473
    %1780 = vmatprep.subr.mxu0 0.0
    %1781 = vmatpush1.msra.mxu0 %v474
    %1782 = vmatprep.subr.mxu0 0.0
    %1783 = vmatpush1.msra.mxu0 %v475
    %1784 = vmatprep.subr.mxu0 0.0
    %1785 = vmatpush1.msra.mxu0 %v476
    %1786 = vmatprep.subr.mxu0 0.0
    %1787 = vmatpush1.msra.mxu0 %v477
    %1788 = vmatprep.subr.mxu0 0.0
    %1789 = vmatpush1.msra.mxu0 %v478
    %1790 = vmatprep.subr.mxu0 0.0
    %1791 = vmatpush1.msra.mxu0 %v479
    %1792 = vmatprep.subr.mxu0 0.0
    %1793 = vmatpush1.msra.mxu0 %v480
    %1794 = vmatprep.subr.mxu0 0.0
    %1795 = vmatpush1.msra.mxu0 %v481
    %1796 = vmatprep.subr.mxu0 0.0
    %1797 = vmatpush1.msra.mxu0 0.0
    %1798 = vmatprep.subr.mxu0 0.0
    %1799 = vmatpush1.msra.mxu0 0.0
    %1800 = vmatprep.subr.mxu0 0.0
    %1801 = vmatpush1.msra.mxu0 0.0
    %1802 = vmatprep.subr.mxu0 0.0
    %1803 = vmatpush1.msra.mxu0 0.0
    %1804 = vmatprep.subr.mxu0 0.0
    %1805 = vmatpush1.msra.mxu0 0.0
    %1806 = vmatprep.subr.mxu0 0.0
    %1807 = vmatpush1.msra.mxu0 0.0
    %1808 = vmatprep.subr.mxu0 0.0
    %1809 = vmatpush1.msra.mxu0 0.0
    %1810 = vmatprep.subr.mxu0 0.0
    %1811 = vmatpush1.msra.mxu0 0.0
    %1812 = vmatprep.subr.mxu0 0.0
    %1813 = vmatpush1.msra.mxu0 0.0
    %1814 = vmatprep.subr.mxu0 0.0
    %1815 = vmatpush1.msra.mxu0 0.0
    %1816 = vmatprep.subr.mxu0 0.0
    %1817 = vmatpush1.msra.mxu0 0.0
    %1818 = vmatprep.subr.mxu0 0.0
    %1819 = vmatpush1.msra.mxu0 0.0
    %1820 = vmatprep.subr.mxu0 0.0
    %1821 = vmatpush1.msra.mxu0 0.0
    %1822 = vmatprep.subr.mxu0 0.0
    %1823 = vmatpush1.msra.mxu0 0.0
    %1824 = vmatprep.subr.mxu0 0.0
    %1825 = vmatpush1.msra.mxu0 0.0
    %1826 = vmatprep.subr.mxu0 0.0
    %1827 = vmatpush1.msra.mxu0 0.0
    %1828 = vmatprep.mubr.f32.mxu0 0.0
    %1829 = vmatmul.mubr.f32.gmra.mrb[0].mxu0 %v1763
    %v1830 = vpop.f32.mrb[0].mxu0
    %v1831 = vadd.f32 0.0, %v1830
    %v1832 = vpop.f32.mrb[0].mxu0
    %1833 = vdwg.mxu0
    %v1834 = vadd.f32 %v1677, %v1831
    %v1835 = vtanh.pop %v1834
    %v1836 = vmul.f32 %v1755, %v1669
    %v1837 = vsub.f32 1.0, %v1755
    %v1838 = vmul.f32 %v1837, %v1835
    %v1839 = vadd.f32 %v1836, %v1838
    %s1840 = scalar_lea.vmem [#allocation4], 56
    %1841 = vst [vmem:[%s1840] sm:$0xff] %v1839
    %1842 = vst [vmem:[#allocation2] sm:$0xff] %v1839
    %1843 = vst [vmem:[#allocation17] sm:$0xff] %v1839
    %v1844 = vld [vmem:[#allocation4] sm:$0xff]
    %v1845 = vld [vmem:[#allocation4 + $0x8] sm:$0xff]
    %v1846 = vld [vmem:[#allocation4 + $0x10] sm:$0xff]
    %v1847 = vld [vmem:[#allocation4 + $0x18] sm:$0xff]
    %v1848 = vld [vmem:[#allocation4 + $0x20] sm:$0xff]
    %v1849 = vld [vmem:[#allocation4 + $0x28] sm:$0xff]
    %v1850 = vld [vmem:[#allocation4 + $0x30] sm:$0xff]
    %v1851 = vld [vmem:[#allocation4 + $0x38] sm:$0xff]
    %v1852 = vld [vmem:[#allocation14] sm:$0xff]
    %v1853 = vld [vmem:[#allocation14 + $0x8] sm:$0xff]
    %v1854 = vld [vmem:[#allocation14 + $0x10] sm:$0xff]
    %v1855 = vld [vmem:[#allocation14 + $0x18] sm:$0xff]
    %v1856 = vld [vmem:[#allocation14 + $0x20] sm:$0xff]
    %v1857 = vld [vmem:[#allocation14 + $0x28] sm:$0xff]
    %v1858 = vld [vmem:[#allocation14 + $0x30] sm:$0xff]
    %v1859 = vld [vmem:[#allocation14 + $0x38] sm:$0xff]
    %v1860 = vld [vmem:[#allocation14 + $0x40] sm:$0xff]
    %v1861 = vld [vmem:[#allocation14 + $0x48] sm:$0xff]
    %v1862 = vld [vmem:[#allocation14 + $0x50] sm:$0xff]
    %v1863 = vld [vmem:[#allocation14 + $0x58] sm:$0xff]
    %v1864 = vld [vmem:[#allocation14 + $0x60] sm:$0xff]
    %v1865 = vld [vmem:[#allocation14 + $0x68] sm:$0xff]
    %v1866 = vld [vmem:[#allocation14 + $0x70] sm:$0xff]
    %v1867 = vld [vmem:[#allocation14 + $0x78] sm:$0xff]
    %v1868 = vld [vmem:[%s7] sm:$0x1]
    %v1870 = vlaneseq
    %v1871 = vshrl.u32 %v1870, 7
    %v1872 = vsub.s32 0, %v1871
    %v1873 = vrot.slane %v1868, %v1872
    %1875 = vmatprep.subr.mxu0 0.0
    %1876 = vmatpush1.msra.mxu0 %v1852
    %1877 = vmatprep.subr.mxu0 0.0
    %1878 = vmatpush1.msra.mxu0 %v1853
    %1879 = vmatprep.subr.mxu0 0.0
    %1880 = vmatpush1.msra.mxu0 %v1854
    %1881 = vmatprep.subr.mxu0 0.0
    %1882 = vmatpush1.msra.mxu0 %v1855
    %1883 = vmatprep.subr.mxu0 0.0
    %1884 = vmatpush1.msra.mxu0 %v1856
    %1885 = vmatprep.subr.mxu0 0.0
    %1886 = vmatpush1.msra.mxu0 %v1857
    %1887 = vmatprep.subr.mxu0 0.0
    %1888 = vmatpush1.msra.mxu0 %v1858
    %1889 = vmatprep.subr.mxu0 0.0
    %1890 = vmatpush1.msra.mxu0 %v1859
    %1891 = vmatprep.subr.mxu0 0.0
    %1892 = vmatpush1.msra.mxu0 %v1860
    %1893 = vmatprep.subr.mxu0 0.0
    %1894 = vmatpush1.msra.mxu0 %v1861
    %1895 = vmatprep.subr.mxu0 0.0
    %1896 = vmatpush1.msra.mxu0 %v1862
    %1897 = vmatprep.subr.mxu0 0.0
    %1898 = vmatpush1.msra.mxu0 %v1863
    %1899 = vmatprep.subr.mxu0 0.0
    %1900 = vmatpush1.msra.mxu0 %v1864
    %1901 = vmatprep.subr.mxu0 0.0
    %1902 = vmatpush1.msra.mxu0 %v1865
    %1903 = vmatprep.subr.mxu0 0.0
    %1904 = vmatpush1.msra.mxu0 %v1866
    %1905 = vmatprep.subr.mxu0 0.0
    %1906 = vmatpush1.msra.mxu0 %v1867
    %1907 = vmatprep.subr.mxu0 0.0
    %1908 = vmatpush1.msra.mxu0 0.0
    %1909 = vmatprep.subr.mxu0 0.0
    %1910 = vmatpush1.msra.mxu0 0.0
    %1911 = vmatprep.subr.mxu0 0.0
    %1912 = vmatpush1.msra.mxu0 0.0
    %1913 = vmatprep.subr.mxu0 0.0
    %1914 = vmatpush1.msra.mxu0 0.0
    %1915 = vmatprep.subr.mxu0 0.0
    %1916 = vmatpush1.msra.mxu0 0.0
    %1917 = vmatprep.subr.mxu0 0.0
    %1918 = vmatpush1.msra.mxu0 0.0
    %1919 = vmatprep.subr.mxu0 0.0
    %1920 = vmatpush1.msra.mxu0 0.0
    %1921 = vmatprep.subr.mxu0 0.0
    %1922 = vmatpush1.msra.mxu0 0.0
    %1923 = vmatprep.subr.mxu0 0.0
    %1924 = vmatpush1.msra.mxu0 0.0
    %1925 = vmatprep.subr.mxu0 0.0
    %1926 = vmatpush1.msra.mxu0 0.0
    %1927 = vmatprep.subr.mxu0 0.0
    %1928 = vmatpush1.msra.mxu0 0.0
    %1929 = vmatprep.subr.mxu0 0.0
    %1930 = vmatpush1.msra.mxu0 0.0
    %1931 = vmatprep.subr.mxu0 0.0
    %1932 = vmatpush1.msra.mxu0 0.0
    %1933 = vmatprep.subr.mxu0 0.0
    %1934 = vmatpush1.msra.mxu0 0.0
    %1935 = vmatprep.subr.mxu0 0.0
    %1936 = vmatpush1.msra.mxu0 0.0
    %1937 = vmatprep.subr.mxu0 0.0
    %1938 = vmatpush1.msra.mxu0 0.0
    %1939 = vmatprep.mubr.f32.mxu0 0.0
    %1940 = vmatmul.mubr.f32.gmra.mrb[0].mxu0 %v1844
    %v1941 = vpop.f32.mrb[0].mxu0
    %v1942 = vadd.f32 %v1873, %v1941
    %v1943 = vpop.f32.mrb[0].mxu0
    %1944 = vmatprep.mubr.f32.mxu0 0.0
    %1945 = vmatmul.mubr.f32.gmra.mrb[0].mxu0 %v1845
    %v1946 = vpop.f32.mrb[0].mxu0
    %v1947 = vadd.f32 %v1873, %v1946
    %v1948 = vpop.f32.mrb[0].mxu0
    %1949 = vmatprep.mubr.f32.mxu0 0.0
    %1950 = vmatmul.mubr.f32.gmra.mrb[0].mxu0 %v1846
    %v1951 = vpop.f32.mrb[0].mxu0
    %v1952 = vadd.f32 %v1873, %v1951
    %v1953 = vpop.f32.mrb[0].mxu0
    %1954 = vmatprep.mubr.f32.mxu0 0.0
    %1955 = vmatmul.mubr.f32.gmra.mrb[0].mxu0 %v1847
    %v1956 = vpop.f32.mrb[0].mxu0
    %v1957 = vadd.f32 %v1873, %v1956
    %v1958 = vpop.f32.mrb[0].mxu0
    %1959 = vmatprep.mubr.f32.mxu0 0.0
    %1960 = vmatmul.mubr.f32.gmra.mrb[0].mxu0 %v1848
    %v1961 = vpop.f32.mrb[0].mxu0
    %v1962 = vadd.f32 %v1873, %v1961
    %v1963 = vpop.f32.mrb[0].mxu0
    %1964 = vmatprep.mubr.f32.mxu0 0.0
    %1965 = vmatmul.mubr.f32.gmra.mrb[0].mxu0 %v1849
    %v1966 = vpop.f32.mrb[0].mxu0
    %v1967 = vadd.f32 %v1873, %v1966
    %v1968 = vpop.f32.mrb[0].mxu0
    %1969 = vmatprep.mubr.f32.mxu0 0.0
    %1970 = vmatmul.mubr.f32.gmra.mrb[0].mxu0 %v1850
    %v1971 = vpop.f32.mrb[0].mxu0
    %v1972 = vadd.f32 %v1873, %v1971
    %v1973 = vpop.f32.mrb[0].mxu0
    %1974 = vmatprep.mubr.f32.mxu0 0.0
    %1975 = vmatmul.mubr.f32.gmra.mrb[0].mxu0 %v1851
    %v1976 = vpop.f32.mrb[0].mxu0
    %v1977 = vadd.f32 %v1873, %v1976
    %v1978 = vpop.f32.mrb[0].mxu0
    %1979 = vdwg.mxu0
    %1980 = vst [vmem:[#allocation16] sm:$0xff] %v1942
    %1981 = vst [vmem:[#allocation16 + $0x8] sm:$0xff] %v1947
    %1982 = vst [vmem:[#allocation16 + $0x10] sm:$0xff] %v1952
    %1983 = vst [vmem:[#allocation16 + $0x18] sm:$0xff] %v1957
    %1984 = vst [vmem:[#allocation16 + $0x20] sm:$0xff] %v1962
    %1985 = vst [vmem:[#allocation16 + $0x28] sm:$0xff] %v1967
    %1986 = vst [vmem:[#allocation16 + $0x30] sm:$0xff] %v1972
    %1987 = vst [vmem:[#allocation16 + $0x38] sm:$0xff] %v1977
    // Predicated region
    $region62: #{tpu_custom_call.1} parent=1 // pred_check
      _
    $region63: #{tpu_custom_call.1} parent=1 // pred_check_branch
      %1989 = sbr.rel (0) target = $region65
    $region64: #{tpu_custom_call.1} parent=1 // pred_region
      %s1991 = ssub.s32 1024, 1024
      %1992 = vsyncadd [#allocation7], %s1991
      %s1993 = sshll.u32 [#allocation16], 4
      %s1994 = int_to_ptr.vmem [resolvable:$true] %s1993
      %1999 = dma.vmem_to_hbm [thread:$0]  %s1994, 1024, %s8, [#allocation7], 128, 128, 8
    $region65: #{tpu_custom_call.1} parent=1 // pred_fallthru
      _
    // Predicated region
    $region66: #{tpu_custom_call.1} parent=1 // pred_check
      _
    $region67: #{tpu_custom_call.1} parent=1 // pred_check_branch
      %2001 = sbr.rel (0) target = $region69
    $region68: #{tpu_custom_call.1} parent=1 // pred_region
      %s2003 = ssub.s32 128, 128
      %2004 = vsyncadd [#allocation18], %s2003
      %s2006 = sshll.u32 [#allocation17], 4
      %s2007 = int_to_ptr.vmem [resolvable:$true] %s2006
      %2009 = dma.vmem_to_hbm [thread:$0]  %s2007, 128, %s9, [#allocation18]
    $region69: #{tpu_custom_call.1} parent=1 // pred_fallthru
      _
    // Predicated region
    $region70: #{tpu_custom_call.1} parent=1 // pred_check
      _
    $region71: #{tpu_custom_call.1} parent=1 // pred_check_branch
      %2011 = sbr.rel (0) target = $region73
    $region72: #{tpu_custom_call.1} parent=1 // pred_region
      %2012 = dma.done [#allocation7], 1024
    $region73: #{tpu_custom_call.1} parent=1 // pred_fallthru
      _
    // Predicated region
    $region74: #{tpu_custom_call.1} parent=1 // pred_check
      _
    $region75: #{tpu_custom_call.1} parent=1 // pred_check_branch
      %2014 = sbr.rel (0) target = $region77
    $region76: #{tpu_custom_call.1} parent=1 // pred_region
      %2015 = dma.done [#allocation18], 128
    $region77: #{tpu_custom_call.1} parent=1 // pred_fallthru
      _
    %2016 = vsyncpa [#allocation6], 1
    %2017 = vsyncpa [#allocation9], 1
    %2018 = vsyncpa [#allocation12], 1
    %2019 = vsyncpa [#allocation15], 1
    %2020 = vsyncpa [#allocation7], 1
    %2021 = vsyncpa [#allocation18], 1

</llo_original>
